<compile_context>
chip_gen: v5e
topology: v5e:2x2
jax: 0.10.0
libtpu: 0.0.40
codegen_flags: <defaults>
</compile_context>

<pallas_src>
import math

import jax
import jax.numpy as jnp
from jax import lax
from jax.experimental import pallas as pl
from jax.experimental.pallas import tpu as pltpu


# --------------------------------------------------------------------------- kernel

def _ghostconv_kernel(x_ref, ht_ref, hb_ref, w1_ref, b1_ref, w2_ref, b2_ref,
                      o_ref, ypad_ref):
    """One (batch, row-strip) tile: cv1 -> depthwise 5x5 -> channel concat, fused.

    ypad_ref holds this strip's cv1 output `y` with a 2-row / 2-col zero border
    (the depthwise conv's pad=2) plus a 2-row halo of real `y` above/below for
    interior strips.  Border-only zeroing is safe because EVERY element of
    ypad_ref is written every grid step:
        cols [0:2] and [W+2:W+4]      <- zeros           (every step)
        rows [2:TH+2],  cols [2:W+2]  <- y of core rows  (every step)
        rows [0:2] / [TH+2:TH+4]      <- halo y, then overridden with zeros for
                                         the first / last strip (image boundary:
                                         the conv pads with zero *y*, not SiLU(BN(0))).
    """
    _, TH, W, C1 = x_ref.shape
    c_ = w1_ref.shape[1]
    t = pl.program_id(1)
    n_t = pl.num_programs(1)
    dt = ypad_ref.dtype

    def silu(v):
        # sigmoid = 1 / (1 + exp(-v)); exp + approx reciprocal both run on the EUP,
        # keeping the epilogue off the VALU.
        return v * pl.reciprocal(1.0 + jnp.exp(-v), approx=True)

    def cv1(x2d):
        # BN scale is folded into w1 host-side, so the epilogue is just +shift -> SiLU.
        z = jnp.dot(x2d, w1_ref[...], preferred_element_type=jnp.float32)
        return silu(z + b1_ref[...])

    # ---- cv1 on the strip's core rows (MXU). This is also the first output half.
    y_core = cv1(x_ref[0].reshape(TH * W, C1)).reshape(TH, W, c_)
    o_ref[0, :, :, :c_] = y_core.astype(o_ref.dtype)

    # ---- cv1 on the 2-row halos above / below the strip (tiny matmuls).
    y_top = cv1(ht_ref[0, 0].reshape(2 * W, C1)).reshape(2, W, c_)
    y_bot = cv1(hb_ref[0, 0].reshape(2 * W, C1)).reshape(2, W, c_)

    # ---- assemble the zero-padded y strip in VMEM (border-only zeroing).
    ypad_ref[:, 0:2, :] = jnp.zeros((TH + 4, 2, c_), dt)            # left cols
    ypad_ref[:, W + 2:W + 4, :] = jnp.zeros((TH + 4, 2, c_), dt)    # right cols
    ypad_ref[2:TH + 2, 2:W + 2, :] = y_core.astype(dt)
    ypad_ref[0:2, 2:W + 2, :] = y_top.astype(dt)
    ypad_ref[TH + 2:TH + 4, 2:W + 2, :] = y_bot.astype(dt)

    @pl.when(t == 0)                        # image top: pad rows of y are zero
    def _():
        ypad_ref[0:2, :, :] = jnp.zeros((2, W + 4, c_), dt)

    @pl.when(t == n_t - 1)                  # image bottom
    def _():
        ypad_ref[TH + 2:TH + 4, :, :] = jnp.zeros((2, W + 4, c_), dt)

    # ---- cv2: depthwise 5x5 (VPU).  One aligned (TH, W+4, c_) strip load per dy;
    #      the 5 dx shifts are in-register sublane slices; accumulate in f32.
    w2 = w2_ref[...]                        # (25, c_) f32, BN scale folded in
    acc = jnp.zeros((TH, W, c_), jnp.float32)
    for dy in range(5):                     # static, fully unrolled taps
        strip = ypad_ref[dy:dy + TH, :, :].astype(jnp.float32)      # (TH, W+4, c_)
        for dx in range(5):
            acc = acc + strip[:, dx:dx + W, :] * w2[5 * dy + dx]
    z = silu(acc + b2_ref[...])

    # ---- second half of torch.cat([y, z], channel), written straight to the output.
    o_ref[0, :, :, c_:] = z.astype(o_ref.dtype)


# --------------------------------------------------------------------------- tiling

def _pick_tile_h(B, H, W, C1, c_, in_bytes, out_bytes, scratch_bytes,
                 budget_bytes=12 * 1024 * 1024):
    """Largest row-strip height (divisor of H) whose per-step working set
    (double-buffered input / halo / output blocks + the ypad scratch) fits the
    budget -- sized with headroom for v7x's 64 MiB VMEM.  Prefers >= 2 total grid
    steps so both v7x TensorCores get work even when B == 1."""
    def est(th):
        x_blk = th * W * C1 * in_bytes
        halo = 2 * (2 * W * C1 * in_bytes)
        o_blk = th * W * (2 * c_) * out_bytes
        ypad = (th + 4) * (W + 4) * c_ * scratch_bytes
        return 2 * (x_blk + halo + o_blk) + ypad
    divs = [d for d in range(H, 0, -1) if H % d == 0 and (d >= 2 or d == H)]
    fitting = [d for d in divs if est(d) <= budget_bytes] or [divs[-1]]
    th = fitting[0]
    if B * (H // th) < 2:
        multi = [d for d in fitting if H // d >= 2]
        if multi:
            th = multi[0]
    return th


# --------------------------------------------------------------------------- wrapper

def ghostconv_forward(x_nhwc, params, *, tile_h=None,
                      compute_dtype=jnp.float32, out_dtype=None):
    """GhostConv forward, NHWC in / NHWC out.

    The model is kept NHWC end-to-end so no layout transposes are needed around
    the kernel (each NCHW<->NHWC transpose would be a full HBM read+write of the
    tensor).  For best MXU utilisation keep C1 and c_ padded to multiples of 128
    and use compute_dtype=bf16; at small channel counts (like the test below) the
    kernel is mem/VPU-bound and lane-underfilled regardless.
    """
    B, H, W, C1 = x_nhwc.shape
    c_ = params["w1"].shape[-1]
    C2 = 2 * c_
    out_dtype = x_nhwc.dtype if out_dtype is None else out_dtype

    # Fold BN scale into the conv weights host-side; the shift stays as the bias.
    w1 = (params["w1"].reshape(C1, c_) * params["scale1"][None, :]).astype(compute_dtype)
    b1 = params["shift1"].reshape(1, c_).astype(jnp.float32)
    w2 = (params["w2"].reshape(25, c_) * params["scale2"][None, :]).astype(jnp.float32)
    b2 = params["shift2"].reshape(1, c_).astype(jnp.float32)
    x = x_nhwc.astype(compute_dtype)

    # bf16 ypad halves the depthwise-phase VMEM traffic (v6e/v7x); f32 accumulation
    # is kept in-kernel either way.  Keep f32 scratch for the f32 path (v5e-friendly).
    scratch_dtype = jnp.float32 if compute_dtype == jnp.float32 else jnp.bfloat16

    if tile_h is None:
        tile_h = _pick_tile_h(B, H, W, C1, c_,
                              jnp.dtype(compute_dtype).itemsize,
                              jnp.dtype(out_dtype).itemsize,
                              jnp.dtype(scratch_dtype).itemsize)
    assert H % tile_h == 0, f"tile_h={tile_h} must divide H={H}"
    HT = H // tile_h
    assert HT == 1 or tile_h >= 2, "row strips need >= 2 rows to carry the 5x5 halo"
    # (H, W multiples of 8 keep the in-kernel reshapes / shifted slices copy-free.)

    # 2-row x halos above / below every strip (zeros at the image boundary).
    # These are tiny (4 rows per strip) and auto-pipelined like everything else.
    zrows = jnp.zeros((B, 1, 2, W, C1), x.dtype)
    if HT > 1:
        top = x[:, :H - tile_h].reshape(B, HT - 1, tile_h, W, C1)[:, :, tile_h - 2:tile_h]
        bot = x[:, tile_h:].reshape(B, HT - 1, tile_h, W, C1)[:, :, 0:2]
        halo_top = jnp.concatenate([zrows, top], axis=1)
        halo_bot = jnp.concatenate([bot, zrows], axis=1)
    else:
        halo_top = zrows
        halo_bot = zrows

    out = pl.pallas_call(
        _ghostconv_kernel,
        out_shape=jax.ShapeDtypeStruct((B, H, W, C2), out_dtype),
        grid=(B, HT),
        in_specs=[
            pl.BlockSpec((1, tile_h, W, C1), lambda b, t: (b, t, 0, 0)),       # x strip
            pl.BlockSpec((1, 1, 2, W, C1), lambda b, t: (b, t, 0, 0, 0)),      # top halo
            pl.BlockSpec((1, 1, 2, W, C1), lambda b, t: (b, t, 0, 0, 0)),      # bottom halo
            pl.BlockSpec((C1, c_), lambda b, t: (0, 0)),                       # w1 (BN folded)
            pl.BlockSpec((1, c_), lambda b, t: (0, 0)),                        # shift1
            pl.BlockSpec((25, c_), lambda b, t: (0, 0)),                       # w2 (BN folded)
            pl.BlockSpec((1, c_), lambda b, t: (0, 0)),                        # shift2
        ],
        out_specs=pl.BlockSpec((1, tile_h, W, C2), lambda b, t: (b, t, 0, 0)),
        scratch_shapes=[pltpu.VMEM((tile_h + 4, W + 4, c_), scratch_dtype)],
        compiler_params=pltpu.CompilerParams(
            dimension_semantics=("parallel", "parallel"),   # megacore-shardable grid
            vmem_limit_bytes=32 * 1024 * 1024),              # headroom, fits v7x 64 MiB
    )(x, halo_top, halo_bot, w1, b1, w2, b2)
    return out


# --------------------------------------------------------------------------- params

def _make_bn(key, cout, eps=1e-5):
    k1, k2, k3, k4 = jax.random.split(key, 4)
    gamma = jax.random.uniform(k1, (cout,), jnp.float32, 0.5, 1.5)
    beta = jax.random.normal(k2, (cout,), jnp.float32) * 0.1
    mean = jax.random.normal(k3, (cout,), jnp.float32) * 0.1
    var = jax.random.uniform(k4, (cout,), jnp.float32, 0.5, 1.5)
    scale = gamma / jnp.sqrt(var + eps)
    shift = beta - mean * scale
    return scale, shift


def init_ghostconv_params(key, c1, c2):
    c_ = c2 // 2
    k1, k2, k3, k4 = jax.random.split(key, 4)
    w1 = jax.random.normal(k1, (1, 1, c1, c_), jnp.float32) / math.sqrt(c1)    # HWIO
    w2 = jax.random.normal(k2, (5, 5, 1, c_), jnp.float32) / math.sqrt(25.0)   # depthwise HWIO
    scale1, shift1 = _make_bn(k3, c_)
    scale2, shift2 = _make_bn(k4, c_)
    return dict(w1=w1, scale1=scale1, shift1=shift1,
                w2=w2, scale2=scale2, shift2=shift2)


# --------------------------------------------------------------------------- pure-JAX reference

def ghostconv_reference(x_nhwc, params):
    c_ = params["w1"].shape[-1]
    y = lax.conv_general_dilated(x_nhwc, params["w1"], (1, 1), [(0, 0), (0, 0)],
                                 dimension_numbers=("NHWC", "HWIO", "NHWC"))
    y = y * params["scale1"] + params["shift1"]
    y = y * jax.nn.sigmoid(y)
    z = lax.conv_general_dilated(y, params["w2"], (1, 1), [(2, 2), (2, 2)],
                                 dimension_numbers=("NHWC", "HWIO", "NHWC"),
                                 feature_group_count=c_)
    z = z * params["scale2"] + params["shift2"]
    z = z * jax.nn.sigmoid(z)
    return jnp.concatenate([y, z], axis=-1)


# --------------------------------------------------------------------------- main

if __name__ == "__main__":
    key = jax.random.PRNGKey(0)
    B, H, W, C1, C2 = 2, 16, 16, 8, 16                      # c_ = 8
    kx, kp = jax.random.split(key)
    x = jax.random.normal(kx, (B, H, W, C1), jnp.float32)   # NHWC end-to-end
    params = init_ghostconv_params(kp, C1, C2)

    ref = jax.block_until_ready(ghostconv_reference(x, params))

    # f32 path; 4 row-strips per image exercises the first / interior / last halo cases.
    out = jax.block_until_ready(ghostconv_forward(x, params, tile_h=4))
    assert out.shape == (B, H, W, C2), out.shape
    if not bool(jnp.allclose(out, ref, atol=2e-2, rtol=2e-2)):
        raise AssertionError(
            f"f32 Pallas/reference mismatch, max abs err = {jnp.max(jnp.abs(out - ref))}")

    # bf16 fast path (bf16 MXU feeds, bf16 output + scratch, f32 accumulation),
    # auto-picked row tile.
    out_bf16 = jax.block_until_ready(
        ghostconv_forward(x, params, compute_dtype=jnp.bfloat16, out_dtype=jnp.bfloat16))
    if not bool(jnp.allclose(out_bf16.astype(jnp.float32), ref, atol=5e-2, rtol=5e-2)):
        raise AssertionError(
            "bf16 Pallas/reference mismatch, max abs err = "
            f"{jnp.max(jnp.abs(out_bf16.astype(jnp.float32) - ref))}")

    print("KERNEL_OK")
</pallas_src>

<mosaic_0001>
module attributes {stable_mosaic.version = 11 : i64} {
  func.func @_ghostconv_kernel(%arg0: i32, %arg1: i32, %arg2: memref<1x4x16x8xf32, #tpu.memory_space<vmem>>, %arg3: memref<1x1x2x16x8xf32, #tpu.memory_space<vmem>>, %arg4: memref<1x1x2x16x8xf32, #tpu.memory_space<vmem>>, %arg5: memref<8x8xf32, #tpu.memory_space<vmem>>, %arg6: memref<1x8xf32, #tpu.memory_space<vmem>>, %arg7: memref<25x8xf32, #tpu.memory_space<vmem>>, %arg8: memref<1x8xf32, #tpu.memory_space<vmem>>, %arg9: memref<1x4x16x16xf32, #tpu.memory_space<vmem>>, %arg10: memref<8x20x8xf32, #tpu.memory_space<vmem>>) attributes {dimension_semantics = [#tpu.dimension_semantics<parallel>, #tpu.dimension_semantics<parallel>], iteration_bounds = array<i64: 2, 4>, scalar_prefetch = 0 : i64, scratch_operands = 1 : i64, tpu.core_type = #tpu.core_type<tc>, window_params = [{transform_indices = @transform_0, window_bounds = array<i64: 1, 4, 16, 8>}, {transform_indices = @transform_1, window_bounds = array<i64: 1, 1, 2, 16, 8>}, {transform_indices = @transform_2, window_bounds = array<i64: 1, 1, 2, 16, 8>}, {pipeline_mode = #tpu.pipeline_mode<synchronous>, transform_indices = @transform_3, window_bounds = array<i64: 8, 8>}, {pipeline_mode = #tpu.pipeline_mode<synchronous>, transform_indices = @transform_4, window_bounds = array<i64: 1, 8>}, {pipeline_mode = #tpu.pipeline_mode<synchronous>, transform_indices = @transform_5, window_bounds = array<i64: 25, 8>}, {pipeline_mode = #tpu.pipeline_mode<synchronous>, transform_indices = @transform_6, window_bounds = array<i64: 1, 8>}, {transform_indices = @transform_7, window_bounds = array<i64: 1, 4, 16, 16>}]} {
    %c0 = arith.constant 0 : index
    %c0_0 = arith.constant 0 : index
    %c0_1 = arith.constant 0 : index
    %c0_2 = arith.constant 0 : index
    %0 = vector.load %arg2[%c0, %c0_0, %c0_1, %c0_2] : memref<1x4x16x8xf32, #tpu.memory_space<vmem>>, vector<1x4x16x8xf32>
    %1 = vector.shape_cast %0 : vector<1x4x16x8xf32> to vector<4x16x8xf32>
    %2 = vector.shape_cast %1 : vector<4x16x8xf32> to vector<64x8xf32>
    %c0_3 = arith.constant 0 : index
    %c0_4 = arith.constant 0 : index
    %3 = vector.load %arg5[%c0_3, %c0_4] : memref<8x8xf32, #tpu.memory_space<vmem>>, vector<8x8xf32>
    %cst = arith.constant dense<0.000000e+00> : vector<64x8xf32>
    %4 = tpu.matmul %2, %3, %cst {dimension_numbers = #tpu.dot_dimension_numbers<[1], [0], [0], [1], [0, 0, 1, 1], [], []>} : vector<64x8xf32>, vector<8x8xf32>, vector<64x8xf32> -> vector<64x8xf32>
    %c0_5 = arith.constant 0 : index
    %c0_6 = arith.constant 0 : index
    %5 = vector.load %arg6[%c0_5, %c0_6] : memref<1x8xf32, #tpu.memory_space<vmem>>, vector<1x8xf32>
    %6 = vector.broadcast %5 : vector<1x8xf32> to vector<64x8xf32>
    %7 = arith.addf %4, %6 : vector<64x8xf32>
    %cst_7 = arith.constant 0.000000e+00 : f32
    %8 = vector.broadcast %cst_7 : f32 to vector<64x8xf32>
    %9 = arith.subf %8, %7 : vector<64x8xf32>
    %10 = math.exp %9 : vector<64x8xf32>
    %cst_8 = arith.constant 1.000000e+00 : f32
    %11 = vector.broadcast %cst_8 : f32 to vector<64x8xf32>
    %12 = arith.addf %11, %10 : vector<64x8xf32>
    %13 = tpu.reciprocal %12 {approx = true} : vector<64x8xf32> -> vector<64x8xf32>
    %14 = arith.mulf %7, %13 : vector<64x8xf32>
    %15 = vector.shape_cast %14 : vector<64x8xf32> to vector<4x16x8xf32>
    %c0_9 = arith.constant 0 : index
    %c0_10 = arith.constant 0 : index
    %c0_11 = arith.constant 0 : index
    %c0_12 = arith.constant 0 : index
    %16 = vector.load %arg9[%c0_9, %c0_10, %c0_11, %c0_12] : memref<1x4x16x16xf32, #tpu.memory_space<vmem>>, vector<1x4x16x8xf32>
    %17 = vector.shape_cast %16 : vector<1x4x16x8xf32> to vector<4x16x8xf32>
    %18 = vector.shape_cast %15 : vector<4x16x8xf32> to vector<1x4x16x8xf32>
    tpu.vector_store %arg9[%c0_9, %c0_10, %c0_11, %c0_12], %18 {strides = array<i32>} : memref<1x4x16x16xf32, #tpu.memory_space<vmem>>, vector<1x4x16x8xf32>,
    %c0_13 = arith.constant 0 : index
    %c0_14 = arith.constant 0 : index
    %c0_15 = arith.constant 0 : index
    %c0_16 = arith.constant 0 : index
    %c0_17 = arith.constant 0 : index
    %19 = vector.load %arg3[%c0_13, %c0_14, %c0_15, %c0_16, %c0_17] : memref<1x1x2x16x8xf32, #tpu.memory_space<vmem>>, vector<1x1x2x16x8xf32>
    %20 = vector.shape_cast %19 : vector<1x1x2x16x8xf32> to vector<2x16x8xf32>
    %21 = vector.shape_cast %20 : vector<2x16x8xf32> to vector<32x8xf32>
    %c0_18 = arith.constant 0 : index
    %c0_19 = arith.constant 0 : index
    %22 = vector.load %arg5[%c0_18, %c0_19] : memref<8x8xf32, #tpu.memory_space<vmem>>, vector<8x8xf32>
    %cst_20 = arith.constant dense<0.000000e+00> : vector<32x8xf32>
    %23 = tpu.matmul %21, %22, %cst_20 {dimension_numbers = #tpu.dot_dimension_numbers<[1], [0], [0], [1], [0, 0, 1, 1], [], []>} : vector<32x8xf32>, vector<8x8xf32>, vector<32x8xf32> -> vector<32x8xf32>
    %c0_21 = arith.constant 0 : index
    %c0_22 = arith.constant 0 : index
    %24 = vector.load %arg6[%c0_21, %c0_22] : memref<1x8xf32, #tpu.memory_space<vmem>>, vector<1x8xf32>
    %25 = vector.broadcast %24 : vector<1x8xf32> to vector<32x8xf32>
    %26 = arith.addf %23, %25 : vector<32x8xf32>
    %cst_23 = arith.constant 0.000000e+00 : f32
    %27 = vector.broadcast %cst_23 : f32 to vector<32x8xf32>
    %28 = arith.subf %27, %26 : vector<32x8xf32>
    %29 = math.exp %28 : vector<32x8xf32>
    %cst_24 = arith.constant 1.000000e+00 : f32
    %30 = vector.broadcast %cst_24 : f32 to vector<32x8xf32>
    %31 = arith.addf %30, %29 : vector<32x8xf32>
    %32 = tpu.reciprocal %31 {approx = true} : vector<32x8xf32> -> vector<32x8xf32>
    %33 = arith.mulf %26, %32 : vector<32x8xf32>
    %34 = vector.shape_cast %33 : vector<32x8xf32> to vector<2x16x8xf32>
    %c0_25 = arith.constant 0 : index
    %c0_26 = arith.constant 0 : index
    %c0_27 = arith.constant 0 : index
    %c0_28 = arith.constant 0 : index
    %c0_29 = arith.constant 0 : index
    %35 = vector.load %arg4[%c0_25, %c0_26, %c0_27, %c0_28, %c0_29] : memref<1x1x2x16x8xf32, #tpu.memory_space<vmem>>, vector<1x1x2x16x8xf32>
    %36 = vector.shape_cast %35 : vector<1x1x2x16x8xf32> to vector<2x16x8xf32>
    %37 = vector.shape_cast %36 : vector<2x16x8xf32> to vector<32x8xf32>
    %c0_30 = arith.constant 0 : index
    %c0_31 = arith.constant 0 : index
    %38 = vector.load %arg5[%c0_30, %c0_31] : memref<8x8xf32, #tpu.memory_space<vmem>>, vector<8x8xf32>
    %cst_32 = arith.constant dense<0.000000e+00> : vector<32x8xf32>
    %39 = tpu.matmul %37, %38, %cst_32 {dimension_numbers = #tpu.dot_dimension_numbers<[1], [0], [0], [1], [0, 0, 1, 1], [], []>} : vector<32x8xf32>, vector<8x8xf32>, vector<32x8xf32> -> vector<32x8xf32>
    %c0_33 = arith.constant 0 : index
    %c0_34 = arith.constant 0 : index
    %40 = vector.load %arg6[%c0_33, %c0_34] : memref<1x8xf32, #tpu.memory_space<vmem>>, vector<1x8xf32>
    %41 = vector.broadcast %40 : vector<1x8xf32> to vector<32x8xf32>
    %42 = arith.addf %39, %41 : vector<32x8xf32>
    %cst_35 = arith.constant 0.000000e+00 : f32
    %43 = vector.broadcast %cst_35 : f32 to vector<32x8xf32>
    %44 = arith.subf %43, %42 : vector<32x8xf32>
    %45 = math.exp %44 : vector<32x8xf32>
    %cst_36 = arith.constant 1.000000e+00 : f32
    %46 = vector.broadcast %cst_36 : f32 to vector<32x8xf32>
    %47 = arith.addf %46, %45 : vector<32x8xf32>
    %48 = tpu.reciprocal %47 {approx = true} : vector<32x8xf32> -> vector<32x8xf32>
    %49 = arith.mulf %42, %48 : vector<32x8xf32>
    %50 = vector.shape_cast %49 : vector<32x8xf32> to vector<2x16x8xf32>
    %cst_37 = arith.constant 0.000000e+00 : f32
    %51 = vector.broadcast %cst_37 : f32 to vector<8x2x8xf32>
    %c0_38 = arith.constant 0 : index
    %c0_39 = arith.constant 0 : index
    %c0_40 = arith.constant 0 : index
    %52 = vector.load %arg10[%c0_38, %c0_39, %c0_40] : memref<8x20x8xf32, #tpu.memory_space<vmem>>, vector<8x2x8xf32>
    tpu.vector_store %arg10[%c0_38, %c0_39, %c0_40], %51 {strides = array<i32>} : memref<8x20x8xf32, #tpu.memory_space<vmem>>, vector<8x2x8xf32>,
    %cst_41 = arith.constant 0.000000e+00 : f32
    %53 = vector.broadcast %cst_41 : f32 to vector<8x2x8xf32>
    %c0_42 = arith.constant 0 : index
    %c18 = arith.constant 18 : index
    %c0_43 = arith.constant 0 : index
    %54 = vector.load %arg10[%c0_42, %c18, %c0_43] : memref<8x20x8xf32, #tpu.memory_space<vmem>>, vector<8x2x8xf32>
    tpu.vector_store %arg10[%c0_42, %c18, %c0_43], %53 {strides = array<i32>} : memref<8x20x8xf32, #tpu.memory_space<vmem>>, vector<8x2x8xf32>,
    %c2 = arith.constant 2 : index
    %c2_44 = arith.constant 2 : index
    %c0_45 = arith.constant 0 : index
    %55 = vector.load %arg10[%c2, %c2_44, %c0_45] : memref<8x20x8xf32, #tpu.memory_space<vmem>>, vector<4x16x8xf32>
    tpu.vector_store %arg10[%c2, %c2_44, %c0_45], %15 {strides = array<i32>} : memref<8x20x8xf32, #tpu.memory_space<vmem>>, vector<4x16x8xf32>,
    %c0_46 = arith.constant 0 : index
    %c2_47 = arith.constant 2 : index
    %c0_48 = arith.constant 0 : index
    %56 = vector.load %arg10[%c0_46, %c2_47, %c0_48] : memref<8x20x8xf32, #tpu.memory_space<vmem>>, vector<2x16x8xf32>
    tpu.vector_store %arg10[%c0_46, %c2_47, %c0_48], %34 {strides = array<i32>} : memref<8x20x8xf32, #tpu.memory_space<vmem>>, vector<2x16x8xf32>,
    %c6 = arith.constant 6 : index
    %c2_49 = arith.constant 2 : index
    %c0_50 = arith.constant 0 : index
    %57 = vector.load %arg10[%c6, %c2_49, %c0_50] : memref<8x20x8xf32, #tpu.memory_space<vmem>>, vector<2x16x8xf32>
    tpu.vector_store %arg10[%c6, %c2_49, %c0_50], %50 {strides = array<i32>} : memref<8x20x8xf32, #tpu.memory_space<vmem>>, vector<2x16x8xf32>,
    %c0_i32 = arith.constant 0 : i32
    %58 = arith.cmpi eq, %arg1, %c0_i32 : i32
    %59 = arith.extui %58 : i1 to i32
    %c0_i32_51 = arith.constant 0 : i32
    %60 = arith.cmpi ne, %59, %c0_i32_51 : i32
    scf.if %60 {
      %cst_75 = arith.constant 0.000000e+00 : f32
      %260 = vector.broadcast %cst_75 : f32 to vector<2x20x8xf32>
      %c0_76 = arith.constant 0 : index
      %c0_77 = arith.constant 0 : index
      %c0_78 = arith.constant 0 : index
      %261 = vector.load %arg10[%c0_76, %c0_77, %c0_78] : memref<8x20x8xf32, #tpu.memory_space<vmem>>, vector<2x20x8xf32>
      tpu.vector_store %arg10[%c0_76, %c0_77, %c0_78], %260 {strides = array<i32>} : memref<8x20x8xf32, #tpu.memory_space<vmem>>, vector<2x20x8xf32>,
    } else {
    }
    %c3_i32 = arith.constant 3 : i32
    %61 = arith.cmpi eq, %arg1, %c3_i32 : i32
    %62 = arith.extui %61 : i1 to i32
    %c0_i32_52 = arith.constant 0 : i32
    %63 = arith.cmpi ne, %62, %c0_i32_52 : i32
    scf.if %63 {
      %cst_75 = arith.constant 0.000000e+00 : f32
      %260 = vector.broadcast %cst_75 : f32 to vector<2x20x8xf32>
      %c6_76 = arith.constant 6 : index
      %c0_77 = arith.constant 0 : index
      %c0_78 = arith.constant 0 : index
      %261 = vector.load %arg10[%c6_76, %c0_77, %c0_78] : memref<8x20x8xf32, #tpu.memory_space<vmem>>, vector<2x20x8xf32>
      tpu.vector_store %arg10[%c6_76, %c0_77, %c0_78], %260 {strides = array<i32>} : memref<8x20x8xf32, #tpu.memory_space<vmem>>, vector<2x20x8xf32>,
    } else {
    }
    %c0_53 = arith.constant 0 : index
    %c0_54 = arith.constant 0 : index
    %64 = vector.load %arg7[%c0_53, %c0_54] : memref<25x8xf32, #tpu.memory_space<vmem>>, vector<25x8xf32>
    %cst_55 = arith.constant 0.000000e+00 : f32
    %65 = vector.broadcast %cst_55 : f32 to vector<4x16x8xf32>
    %c0_56 = arith.constant 0 : index
    %c0_57 = arith.constant 0 : index
    %c0_58 = arith.constant 0 : index
    %66 = vector.load %arg10[%c0_56, %c0_57, %c0_58] : memref<8x20x8xf32, #tpu.memory_space<vmem>>, vector<4x20x8xf32>
    %67 = vector.extract_strided_slice %66 {offsets = [0, 0, 0], sizes = [4, 16, 8], strides = [1, 1, 1]} : vector<4x20x8xf32> to vector<4x16x8xf32>
    %68 = vector.extract_strided_slice %64 {offsets = [0, 0], sizes = [1, 8], strides = [1, 1]} : vector<25x8xf32> to vector<1x8xf32>
    %69 = vector.shape_cast %68 : vector<1x8xf32> to vector<8xf32>
    %70 = vector.shape_cast %69 : vector<8xf32> to vector<1x1x8xf32>
    %71 = vector.broadcast %70 : vector<1x1x8xf32> to vector<4x16x8xf32>
    %72 = arith.mulf %67, %71 : vector<4x16x8xf32>
    %73 = arith.addf %65, %72 : vector<4x16x8xf32>
    %74 = vector.extract_strided_slice %66 {offsets = [0, 1, 0], sizes = [4, 16, 8], strides = [1, 1, 1]} : vector<4x20x8xf32> to vector<4x16x8xf32>
    %75 = vector.extract_strided_slice %64 {offsets = [1, 0], sizes = [1, 8], strides = [1, 1]} : vector<25x8xf32> to vector<1x8xf32>
    %76 = vector.shape_cast %75 : vector<1x8xf32> to vector<8xf32>
    %77 = vector.shape_cast %76 : vector<8xf32> to vector<1x1x8xf32>
    %78 = vector.broadcast %77 : vector<1x1x8xf32> to vector<4x16x8xf32>
    %79 = arith.mulf %74, %78 : vector<4x16x8xf32>
    %80 = arith.addf %73, %79 : vector<4x16x8xf32>
    %81 = vector.extract_strided_slice %66 {offsets = [0, 2, 0], sizes = [4, 16, 8], strides = [1, 1, 1]} : vector<4x20x8xf32> to vector<4x16x8xf32>
    %82 = vector.extract_strided_slice %64 {offsets = [2, 0], sizes = [1, 8], strides = [1, 1]} : vector<25x8xf32> to vector<1x8xf32>
    %83 = vector.shape_cast %82 : vector<1x8xf32> to vector<8xf32>
    %84 = vector.shape_cast %83 : vector<8xf32> to vector<1x1x8xf32>
    %85 = vector.broadcast %84 : vector<1x1x8xf32> to vector<4x16x8xf32>
    %86 = arith.mulf %81, %85 : vector<4x16x8xf32>
    %87 = arith.addf %80, %86 : vector<4x16x8xf32>
    %88 = vector.extract_strided_slice %66 {offsets = [0, 3, 0], sizes = [4, 16, 8], strides = [1, 1, 1]} : vector<4x20x8xf32> to vector<4x16x8xf32>
    %89 = vector.extract_strided_slice %64 {offsets = [3, 0], sizes = [1, 8], strides = [1, 1]} : vector<25x8xf32> to vector<1x8xf32>
    %90 = vector.shape_cast %89 : vector<1x8xf32> to vector<8xf32>
    %91 = vector.shape_cast %90 : vector<8xf32> to vector<1x1x8xf32>
    %92 = vector.broadcast %91 : vector<1x1x8xf32> to vector<4x16x8xf32>
    %93 = arith.mulf %88, %92 : vector<4x16x8xf32>
    %94 = arith.addf %87, %93 : vector<4x16x8xf32>
    %95 = vector.extract_strided_slice %66 {offsets = [0, 4, 0], sizes = [4, 16, 8], strides = [1, 1, 1]} : vector<4x20x8xf32> to vector<4x16x8xf32>
    %96 = vector.extract_strided_slice %64 {offsets = [4, 0], sizes = [1, 8], strides = [1, 1]} : vector<25x8xf32> to vector<1x8xf32>
    %97 = vector.shape_cast %96 : vector<1x8xf32> to vector<8xf32>
    %98 = vector.shape_cast %97 : vector<8xf32> to vector<1x1x8xf32>
    %99 = vector.broadcast %98 : vector<1x1x8xf32> to vector<4x16x8xf32>
    %100 = arith.mulf %95, %99 : vector<4x16x8xf32>
    %101 = arith.addf %94, %100 : vector<4x16x8xf32>
    %c1 = arith.constant 1 : index
    %c0_59 = arith.constant 0 : index
    %c0_60 = arith.constant 0 : index
    %102 = vector.load %arg10[%c1, %c0_59, %c0_60] : memref<8x20x8xf32, #tpu.memory_space<vmem>>, vector<4x20x8xf32>
    %103 = vector.extract_strided_slice %102 {offsets = [0, 0, 0], sizes = [4, 16, 8], strides = [1, 1, 1]} : vector<4x20x8xf32> to vector<4x16x8xf32>
    %104 = vector.extract_strided_slice %64 {offsets = [5, 0], sizes = [1, 8], strides = [1, 1]} : vector<25x8xf32> to vector<1x8xf32>
    %105 = vector.shape_cast %104 : vector<1x8xf32> to vector<8xf32>
    %106 = vector.shape_cast %105 : vector<8xf32> to vector<1x1x8xf32>
    %107 = vector.broadcast %106 : vector<1x1x8xf32> to vector<4x16x8xf32>
    %108 = arith.mulf %103, %107 : vector<4x16x8xf32>
    %109 = arith.addf %101, %108 : vector<4x16x8xf32>
    %110 = vector.extract_strided_slice %102 {offsets = [0, 1, 0], sizes = [4, 16, 8], strides = [1, 1, 1]} : vector<4x20x8xf32> to vector<4x16x8xf32>
    %111 = vector.extract_strided_slice %64 {offsets = [6, 0], sizes = [1, 8], strides = [1, 1]} : vector<25x8xf32> to vector<1x8xf32>
    %112 = vector.shape_cast %111 : vector<1x8xf32> to vector<8xf32>
    %113 = vector.shape_cast %112 : vector<8xf32> to vector<1x1x8xf32>
    %114 = vector.broadcast %113 : vector<1x1x8xf32> to vector<4x16x8xf32>
    %115 = arith.mulf %110, %114 : vector<4x16x8xf32>
    %116 = arith.addf %109, %115 : vector<4x16x8xf32>
    %117 = vector.extract_strided_slice %102 {offsets = [0, 2, 0], sizes = [4, 16, 8], strides = [1, 1, 1]} : vector<4x20x8xf32> to vector<4x16x8xf32>
    %118 = vector.extract_strided_slice %64 {offsets = [7, 0], sizes = [1, 8], strides = [1, 1]} : vector<25x8xf32> to vector<1x8xf32>
    %119 = vector.shape_cast %118 : vector<1x8xf32> to vector<8xf32>
    %120 = vector.shape_cast %119 : vector<8xf32> to vector<1x1x8xf32>
    %121 = vector.broadcast %120 : vector<1x1x8xf32> to vector<4x16x8xf32>
    %122 = arith.mulf %117, %121 : vector<4x16x8xf32>
    %123 = arith.addf %116, %122 : vector<4x16x8xf32>
    %124 = vector.extract_strided_slice %102 {offsets = [0, 3, 0], sizes = [4, 16, 8], strides = [1, 1, 1]} : vector<4x20x8xf32> to vector<4x16x8xf32>
    %125 = vector.extract_strided_slice %64 {offsets = [8, 0], sizes = [1, 8], strides = [1, 1]} : vector<25x8xf32> to vector<1x8xf32>
    %126 = vector.shape_cast %125 : vector<1x8xf32> to vector<8xf32>
    %127 = vector.shape_cast %126 : vector<8xf32> to vector<1x1x8xf32>
    %128 = vector.broadcast %127 : vector<1x1x8xf32> to vector<4x16x8xf32>
    %129 = arith.mulf %124, %128 : vector<4x16x8xf32>
    %130 = arith.addf %123, %129 : vector<4x16x8xf32>
    %131 = vector.extract_strided_slice %102 {offsets = [0, 4, 0], sizes = [4, 16, 8], strides = [1, 1, 1]} : vector<4x20x8xf32> to vector<4x16x8xf32>
    %132 = vector.extract_strided_slice %64 {offsets = [9, 0], sizes = [1, 8], strides = [1, 1]} : vector<25x8xf32> to vector<1x8xf32>
    %133 = vector.shape_cast %132 : vector<1x8xf32> to vector<8xf32>
    %134 = vector.shape_cast %133 : vector<8xf32> to vector<1x1x8xf32>
    %135 = vector.broadcast %134 : vector<1x1x8xf32> to vector<4x16x8xf32>
    %136 = arith.mulf %131, %135 : vector<4x16x8xf32>
    %137 = arith.addf %130, %136 : vector<4x16x8xf32>
    %c2_61 = arith.constant 2 : index
    %c0_62 = arith.constant 0 : index
    %c0_63 = arith.constant 0 : index
    %138 = vector.load %arg10[%c2_61, %c0_62, %c0_63] : memref<8x20x8xf32, #tpu.memory_space<vmem>>, vector<4x20x8xf32>
    %139 = vector.extract_strided_slice %138 {offsets = [0, 0, 0], sizes = [4, 16, 8], strides = [1, 1, 1]} : vector<4x20x8xf32> to vector<4x16x8xf32>
    %140 = vector.extract_strided_slice %64 {offsets = [10, 0], sizes = [1, 8], strides = [1, 1]} : vector<25x8xf32> to vector<1x8xf32>
    %141 = vector.shape_cast %140 : vector<1x8xf32> to vector<8xf32>
    %142 = vector.shape_cast %141 : vector<8xf32> to vector<1x1x8xf32>
    %143 = vector.broadcast %142 : vector<1x1x8xf32> to vector<4x16x8xf32>
    %144 = arith.mulf %139, %143 : vector<4x16x8xf32>
    %145 = arith.addf %137, %144 : vector<4x16x8xf32>
    %146 = vector.extract_strided_slice %138 {offsets = [0, 1, 0], sizes = [4, 16, 8], strides = [1, 1, 1]} : vector<4x20x8xf32> to vector<4x16x8xf32>
    %147 = vector.extract_strided_slice %64 {offsets = [11, 0], sizes = [1, 8], strides = [1, 1]} : vector<25x8xf32> to vector<1x8xf32>
    %148 = vector.shape_cast %147 : vector<1x8xf32> to vector<8xf32>
    %149 = vector.shape_cast %148 : vector<8xf32> to vector<1x1x8xf32>
    %150 = vector.broadcast %149 : vector<1x1x8xf32> to vector<4x16x8xf32>
    %151 = arith.mulf %146, %150 : vector<4x16x8xf32>
    %152 = arith.addf %145, %151 : vector<4x16x8xf32>
    %153 = vector.extract_strided_slice %138 {offsets = [0, 2, 0], sizes = [4, 16, 8], strides = [1, 1, 1]} : vector<4x20x8xf32> to vector<4x16x8xf32>
    %154 = vector.extract_strided_slice %64 {offsets = [12, 0], sizes = [1, 8], strides = [1, 1]} : vector<25x8xf32> to vector<1x8xf32>
    %155 = vector.shape_cast %154 : vector<1x8xf32> to vector<8xf32>
    %156 = vector.shape_cast %155 : vector<8xf32> to vector<1x1x8xf32>
    %157 = vector.broadcast %156 : vector<1x1x8xf32> to vector<4x16x8xf32>
    %158 = arith.mulf %153, %157 : vector<4x16x8xf32>
    %159 = arith.addf %152, %158 : vector<4x16x8xf32>
    %160 = vector.extract_strided_slice %138 {offsets = [0, 3, 0], sizes = [4, 16, 8], strides = [1, 1, 1]} : vector<4x20x8xf32> to vector<4x16x8xf32>
    %161 = vector.extract_strided_slice %64 {offsets = [13, 0], sizes = [1, 8], strides = [1, 1]} : vector<25x8xf32> to vector<1x8xf32>
    %162 = vector.shape_cast %161 : vector<1x8xf32> to vector<8xf32>
    %163 = vector.shape_cast %162 : vector<8xf32> to vector<1x1x8xf32>
    %164 = vector.broadcast %163 : vector<1x1x8xf32> to vector<4x16x8xf32>
    %165 = arith.mulf %160, %164 : vector<4x16x8xf32>
    %166 = arith.addf %159, %165 : vector<4x16x8xf32>
    %167 = vector.extract_strided_slice %138 {offsets = [0, 4, 0], sizes = [4, 16, 8], strides = [1, 1, 1]} : vector<4x20x8xf32> to vector<4x16x8xf32>
    %168 = vector.extract_strided_slice %64 {offsets = [14, 0], sizes = [1, 8], strides = [1, 1]} : vector<25x8xf32> to vector<1x8xf32>
    %169 = vector.shape_cast %168 : vector<1x8xf32> to vector<8xf32>
    %170 = vector.shape_cast %169 : vector<8xf32> to vector<1x1x8xf32>
    %171 = vector.broadcast %170 : vector<1x1x8xf32> to vector<4x16x8xf32>
    %172 = arith.mulf %167, %171 : vector<4x16x8xf32>
    %173 = arith.addf %166, %172 : vector<4x16x8xf32>
    %c3 = arith.constant 3 : index
    %c0_64 = arith.constant 0 : index
    %c0_65 = arith.constant 0 : index
    %174 = vector.load %arg10[%c3, %c0_64, %c0_65] : memref<8x20x8xf32, #tpu.memory_space<vmem>>, vector<4x20x8xf32>
    %175 = vector.extract_strided_slice %174 {offsets = [0, 0, 0], sizes = [4, 16, 8], strides = [1, 1, 1]} : vector<4x20x8xf32> to vector<4x16x8xf32>
    %176 = vector.extract_strided_slice %64 {offsets = [15, 0], sizes = [1, 8], strides = [1, 1]} : vector<25x8xf32> to vector<1x8xf32>
    %177 = vector.shape_cast %176 : vector<1x8xf32> to vector<8xf32>
    %178 = vector.shape_cast %177 : vector<8xf32> to vector<1x1x8xf32>
    %179 = vector.broadcast %178 : vector<1x1x8xf32> to vector<4x16x8xf32>
    %180 = arith.mulf %175, %179 : vector<4x16x8xf32>
    %181 = arith.addf %173, %180 : vector<4x16x8xf32>
    %182 = vector.extract_strided_slice %174 {offsets = [0, 1, 0], sizes = [4, 16, 8], strides = [1, 1, 1]} : vector<4x20x8xf32> to vector<4x16x8xf32>
    %183 = vector.extract_strided_slice %64 {offsets = [16, 0], sizes = [1, 8], strides = [1, 1]} : vector<25x8xf32> to vector<1x8xf32>
    %184 = vector.shape_cast %183 : vector<1x8xf32> to vector<8xf32>
    %185 = vector.shape_cast %184 : vector<8xf32> to vector<1x1x8xf32>
    %186 = vector.broadcast %185 : vector<1x1x8xf32> to vector<4x16x8xf32>
    %187 = arith.mulf %182, %186 : vector<4x16x8xf32>
    %188 = arith.addf %181, %187 : vector<4x16x8xf32>
    %189 = vector.extract_strided_slice %174 {offsets = [0, 2, 0], sizes = [4, 16, 8], strides = [1, 1, 1]} : vector<4x20x8xf32> to vector<4x16x8xf32>
    %190 = vector.extract_strided_slice %64 {offsets = [17, 0], sizes = [1, 8], strides = [1, 1]} : vector<25x8xf32> to vector<1x8xf32>
    %191 = vector.shape_cast %190 : vector<1x8xf32> to vector<8xf32>
    %192 = vector.shape_cast %191 : vector<8xf32> to vector<1x1x8xf32>
    %193 = vector.broadcast %192 : vector<1x1x8xf32> to vector<4x16x8xf32>
    %194 = arith.mulf %189, %193 : vector<4x16x8xf32>
    %195 = arith.addf %188, %194 : vector<4x16x8xf32>
    %196 = vector.extract_strided_slice %174 {offsets = [0, 3, 0], sizes = [4, 16, 8], strides = [1, 1, 1]} : vector<4x20x8xf32> to vector<4x16x8xf32>
    %197 = vector.extract_strided_slice %64 {offsets = [18, 0], sizes = [1, 8], strides = [1, 1]} : vector<25x8xf32> to vector<1x8xf32>
    %198 = vector.shape_cast %197 : vector<1x8xf32> to vector<8xf32>
    %199 = vector.shape_cast %198 : vector<8xf32> to vector<1x1x8xf32>
    %200 = vector.broadcast %199 : vector<1x1x8xf32> to vector<4x16x8xf32>
    %201 = arith.mulf %196, %200 : vector<4x16x8xf32>
    %202 = arith.addf %195, %201 : vector<4x16x8xf32>
    %203 = vector.extract_strided_slice %174 {offsets = [0, 4, 0], sizes = [4, 16, 8], strides = [1, 1, 1]} : vector<4x20x8xf32> to vector<4x16x8xf32>
    %204 = vector.extract_strided_slice %64 {offsets = [19, 0], sizes = [1, 8], strides = [1, 1]} : vector<25x8xf32> to vector<1x8xf32>
    %205 = vector.shape_cast %204 : vector<1x8xf32> to vector<8xf32>
    %206 = vector.shape_cast %205 : vector<8xf32> to vector<1x1x8xf32>
    %207 = vector.broadcast %206 : vector<1x1x8xf32> to vector<4x16x8xf32>
    %208 = arith.mulf %203, %207 : vector<4x16x8xf32>
    %209 = arith.addf %202, %208 : vector<4x16x8xf32>
    %c4 = arith.constant 4 : index
    %c0_66 = arith.constant 0 : index
    %c0_67 = arith.constant 0 : index
    %210 = vector.load %arg10[%c4, %c0_66, %c0_67] : memref<8x20x8xf32, #tpu.memory_space<vmem>>, vector<4x20x8xf32>
    %211 = vector.extract_strided_slice %210 {offsets = [0, 0, 0], sizes = [4, 16, 8], strides = [1, 1, 1]} : vector<4x20x8xf32> to vector<4x16x8xf32>
    %212 = vector.extract_strided_slice %64 {offsets = [20, 0], sizes = [1, 8], strides = [1, 1]} : vector<25x8xf32> to vector<1x8xf32>
    %213 = vector.shape_cast %212 : vector<1x8xf32> to vector<8xf32>
    %214 = vector.shape_cast %213 : vector<8xf32> to vector<1x1x8xf32>
    %215 = vector.broadcast %214 : vector<1x1x8xf32> to vector<4x16x8xf32>
    %216 = arith.mulf %211, %215 : vector<4x16x8xf32>
    %217 = arith.addf %209, %216 : vector<4x16x8xf32>
    %218 = vector.extract_strided_slice %210 {offsets = [0, 1, 0], sizes = [4, 16, 8], strides = [1, 1, 1]} : vector<4x20x8xf32> to vector<4x16x8xf32>
    %219 = vector.extract_strided_slice %64 {offsets = [21, 0], sizes = [1, 8], strides = [1, 1]} : vector<25x8xf32> to vector<1x8xf32>
    %220 = vector.shape_cast %219 : vector<1x8xf32> to vector<8xf32>
    %221 = vector.shape_cast %220 : vector<8xf32> to vector<1x1x8xf32>
    %222 = vector.broadcast %221 : vector<1x1x8xf32> to vector<4x16x8xf32>
    %223 = arith.mulf %218, %222 : vector<4x16x8xf32>
    %224 = arith.addf %217, %223 : vector<4x16x8xf32>
    %225 = vector.extract_strided_slice %210 {offsets = [0, 2, 0], sizes = [4, 16, 8], strides = [1, 1, 1]} : vector<4x20x8xf32> to vector<4x16x8xf32>
    %226 = vector.extract_strided_slice %64 {offsets = [22, 0], sizes = [1, 8], strides = [1, 1]} : vector<25x8xf32> to vector<1x8xf32>
    %227 = vector.shape_cast %226 : vector<1x8xf32> to vector<8xf32>
    %228 = vector.shape_cast %227 : vector<8xf32> to vector<1x1x8xf32>
    %229 = vector.broadcast %228 : vector<1x1x8xf32> to vector<4x16x8xf32>
    %230 = arith.mulf %225, %229 : vector<4x16x8xf32>
    %231 = arith.addf %224, %230 : vector<4x16x8xf32>
    %232 = vector.extract_strided_slice %210 {offsets = [0, 3, 0], sizes = [4, 16, 8], strides = [1, 1, 1]} : vector<4x20x8xf32> to vector<4x16x8xf32>
    %233 = vector.extract_strided_slice %64 {offsets = [23, 0], sizes = [1, 8], strides = [1, 1]} : vector<25x8xf32> to vector<1x8xf32>
    %234 = vector.shape_cast %233 : vector<1x8xf32> to vector<8xf32>
    %235 = vector.shape_cast %234 : vector<8xf32> to vector<1x1x8xf32>
    %236 = vector.broadcast %235 : vector<1x1x8xf32> to vector<4x16x8xf32>
    %237 = arith.mulf %232, %236 : vector<4x16x8xf32>
    %238 = arith.addf %231, %237 : vector<4x16x8xf32>
    %239 = vector.extract_strided_slice %210 {offsets = [0, 4, 0], sizes = [4, 16, 8], strides = [1, 1, 1]} : vector<4x20x8xf32> to vector<4x16x8xf32>
    %240 = vector.extract_strided_slice %64 {offsets = [24, 0], sizes = [1, 8], strides = [1, 1]} : vector<25x8xf32> to vector<1x8xf32>
    %241 = vector.shape_cast %240 : vector<1x8xf32> to vector<8xf32>
    %242 = vector.shape_cast %241 : vector<8xf32> to vector<1x1x8xf32>
    %243 = vector.broadcast %242 : vector<1x1x8xf32> to vector<4x16x8xf32>
    %244 = arith.mulf %239, %243 : vector<4x16x8xf32>
    %245 = arith.addf %238, %244 : vector<4x16x8xf32>
    %c0_68 = arith.constant 0 : index
    %c0_69 = arith.constant 0 : index
    %246 = vector.load %arg8[%c0_68, %c0_69] : memref<1x8xf32, #tpu.memory_space<vmem>>, vector<1x8xf32>
    %247 = vector.shape_cast %246 : vector<1x8xf32> to vector<1x1x8xf32>
    %248 = vector.broadcast %247 : vector<1x1x8xf32> to vector<4x16x8xf32>
    %249 = arith.addf %245, %248 : vector<4x16x8xf32>
    %cst_70 = arith.constant 0.000000e+00 : f32
    %250 = vector.broadcast %cst_70 : f32 to vector<4x16x8xf32>
    %251 = arith.subf %250, %249 : vector<4x16x8xf32>
    %252 = math.exp %251 : vector<4x16x8xf32>
    %cst_71 = arith.constant 1.000000e+00 : f32
    %253 = vector.broadcast %cst_71 : f32 to vector<4x16x8xf32>
    %254 = arith.addf %253, %252 : vector<4x16x8xf32>
    %255 = tpu.reciprocal %254 {approx = true} : vector<4x16x8xf32> -> vector<4x16x8xf32>
    %256 = arith.mulf %249, %255 : vector<4x16x8xf32>
    %c0_72 = arith.constant 0 : index
    %c0_73 = arith.constant 0 : index
    %c0_74 = arith.constant 0 : index
    %c8 = arith.constant 8 : index
    %257 = vector.load %arg9[%c0_72, %c0_73, %c0_74, %c8] : memref<1x4x16x16xf32, #tpu.memory_space<vmem>>, vector<1x4x16x8xf32>
    %258 = vector.shape_cast %257 : vector<1x4x16x8xf32> to vector<4x16x8xf32>
    %259 = vector.shape_cast %256 : vector<4x16x8xf32> to vector<1x4x16x8xf32>
    tpu.vector_store %arg9[%c0_72, %c0_73, %c0_74, %c8], %259 {strides = array<i32>} : memref<1x4x16x16xf32, #tpu.memory_space<vmem>>, vector<1x4x16x8xf32>,
    return
  }
  func.func @transform_0(%arg0: i32, %arg1: i32) -> (i32, i32, i32, i32) {
    %c0_i32 = arith.constant 0 : i32
    %c0_i32_0 = arith.constant 0 : i32
    %c0_i32_1 = arith.constant 0 : i32
    return %arg0, %arg1, %c0_i32, %c0_i32_0 : i32, i32, i32, i32
  }
  func.func @transform_1(%arg0: i32, %arg1: i32) -> (i32, i32, i32, i32, i32) {
    %c0_i32 = arith.constant 0 : i32
    %c0_i32_0 = arith.constant 0 : i32
    %c0_i32_1 = arith.constant 0 : i32
    %c0_i32_2 = arith.constant 0 : i32
    return %arg0, %arg1, %c0_i32, %c0_i32_0, %c0_i32_1 : i32, i32, i32, i32, i32
  }
  func.func @transform_2(%arg0: i32, %arg1: i32) -> (i32, i32, i32, i32, i32) {
    %c0_i32 = arith.constant 0 : i32
    %c0_i32_0 = arith.constant 0 : i32
    %c0_i32_1 = arith.constant 0 : i32
    %c0_i32_2 = arith.constant 0 : i32
    return %arg0, %arg1, %c0_i32, %c0_i32_0, %c0_i32_1 : i32, i32, i32, i32, i32
  }
  func.func @transform_3(%arg0: i32, %arg1: i32) -> (i32, i32) {
    %c0_i32 = arith.constant 0 : i32
    %c0_i32_0 = arith.constant 0 : i32
    %c0_i32_1 = arith.constant 0 : i32
    return %c0_i32, %c0_i32_0 : i32, i32
  }
  func.func @transform_4(%arg0: i32, %arg1: i32) -> (i32, i32) {
    %c0_i32 = arith.constant 0 : i32
    %c0_i32_0 = arith.constant 0 : i32
    %c0_i32_1 = arith.constant 0 : i32
    return %c0_i32, %c0_i32_0 : i32, i32
  }
  func.func @transform_5(%arg0: i32, %arg1: i32) -> (i32, i32) {
    %c0_i32 = arith.constant 0 : i32
    %c0_i32_0 = arith.constant 0 : i32
    %c0_i32_1 = arith.constant 0 : i32
    return %c0_i32, %c0_i32_0 : i32, i32
  }
  func.func @transform_6(%arg0: i32, %arg1: i32) -> (i32, i32) {
    %c0_i32 = arith.constant 0 : i32
    %c0_i32_0 = arith.constant 0 : i32
    %c0_i32_1 = arith.constant 0 : i32
    return %c0_i32, %c0_i32_0 : i32, i32
  }
  func.func @transform_7(%arg0: i32, %arg1: i32) -> (i32, i32, i32, i32) {
    %c0_i32 = arith.constant 0 : i32
    %c0_i32_0 = arith.constant 0 : i32
    %c0_i32_1 = arith.constant 0 : i32
    return %arg0, %arg1, %c0_i32, %c0_i32_0 : i32, i32, i32, i32
  }
}

</mosaic_0001>

<llo_original>
// kernel: tpu_custom_call.1
$region0: #{tpu_custom_call.1}
  #allocation0 [shape = 'u32[]', space=smem, size = 0x4, offset = 0x4, fixed_abs, tag = 'smem constant byte address 0x4 - core index']
  #allocation1 [shape = 'u32[72,128]{1,0:T(1,128)}', space=vmem, size = 0x9000, scoped, tag = 'internal scratch']
  #allocation2 [shape = 'f32[8,20,8]{2,1,0:T(8,128)}', space=vmem, size = 0x18000, scoped, tag = 'scratch operand']
  %s0 = inlined_call_operand.vmem [shape: f32[2,16,16,8], index: 0, kind: input, shape index: {}]
  %s1 = inlined_call_operand.vmem [shape: f32[2,4,2,16,8], index: 1, kind: input, shape index: {}]
  %s2 = inlined_call_operand.vmem [shape: f32[2,4,2,16,8], index: 2, kind: input, shape index: {}]
  %s3 = inlined_call_operand.vmem [shape: f32[8,8], index: 3, kind: input, shape index: {}]
  %s4 = inlined_call_operand.vmem [shape: f32[1,8], index: 4, kind: input, shape index: {}]
  %s5 = inlined_call_operand.vmem [shape: f32[25,8], index: 5, kind: input, shape index: {}]
  %s6 = inlined_call_operand.vmem [shape: f32[1,8], index: 6, kind: input, shape index: {}]
  %s7 = inlined_call_operand.hbm [shape: f32[2,16,16,16], index: 7, kind: output, shape index: {}]
  %s8 = sld [smem:[#allocation0]]
  $region69: #{tpu_custom_call.1} parent=0
    _
  %s10 = ssub.s32 1, %s8
  %s11 = scalar_select 0, %s10, %s8
  $region1: #{tpu_custom_call.1} parent=0
    #allocation3 [shape = 'u8[65536]{0}', space=vmem, size = 0x10000, scoped, tag = 'output window, operand 0']
    #allocation4 [shape = 's32[2]{0}', space=sflag, size = 0x8, scoped, tag = 'scoped memory for tpu_custom_call.1']
    %12 = vsyncpa [#allocation4], 0
    %s13 = scalar_lea.sflag [#allocation4], 1
    %14 = vsyncpa %s13, 0
    loop: start=0, step=1, limit=10
    $region2: #{tpu_custom_call.1} parent=1 // loop_pre_header
      _
    $region3: #{tpu_custom_call.1} parent=1 // loop_header
      %s16 = sphi 0, %s20
      %p17 = scmp.ge.s32.totalorder %s16, 10
      %s23 = sphi 0, %s35
      %s24 = sphi 0, %s31
      %s25 = sphi 0, %s23
      %s26 = sphi 0, %s24
      %s27 = sphi 0, %s25
      %s28 = sphi 0, %s26
      %s40 = sphi 0, %s42
      %s43 = sphi 0, %s40
      %s44 = sphi 0, %s43
      %s60 = sphi 0, %s44
      %s68 = sphi 0, %s70
      %s71 = sphi 0, %s68
      %s72 = sphi 0, %s71
      %s88 = sphi 0, %s72
      %s96 = sphi 0, %s98
      %s99 = sphi 0, %s96
      %s100 = sphi 0, %s99
      %s116 = sphi 0, %s100
      %s120 = sphi 0, %s120
      %s122 = sphi 0, %s120
      %s123 = sphi 0, %s122
      %s137 = sphi 0, %s123
      %s141 = sphi 0, %s141
      %s143 = sphi 0, %s141
      %s144 = sphi 0, %s143
      %s158 = sphi 0, %s144
      %s162 = sphi 0, %s162
      %s164 = sphi 0, %s162
      %s165 = sphi 0, %s164
      %s179 = sphi 0, %s165
      %s183 = sphi 0, %s183
      %s185 = sphi 0, %s183
      %s186 = sphi 0, %s185
      %s200 = sphi 0, %s186
      %s208 = sphi 0, %s210
      %s211 = sphi 0, %s208
      %s212 = sphi 0, %s211
      %s228 = sphi 0, %s212
    $region4: #{tpu_custom_call.1} parent=1 // loop_header_branch
      %19 = sbr.rel (%p17) target = $region8
    $region5: #{tpu_custom_call.1} parent=1 // loop_body
      %s21 = ssub.s32 %s16, 1
      %s22 = ssub.s32 %s16, 2
      %s29 = sadd.s32 1, %s24
      %p30 = scmp.ge.s32.totalorder %s29, 4
      %s31 = scalar_select %p30, 0, %s29
      %s32 = sadd.s32 1, %s23
      %s33 = scalar_select %p30, %s32, %s23
      %p34 = scmp.ge.s32.totalorder %s33, 2
      %s35 = scalar_select %p34, 0, %s33
      %s36 = ssub.s32 %s23, %s35
      %s37 = ssub.s32 %s24, %s31
      %s38 = sor.u32 %s36, %s37
      %p39 = scmp.eq.s32.totalorder %s38, 0
      %s41 = sadd.s32 %s40, 1
      %s42 = scalar_select %p39, %s40, %s41
      %p45 = pneg %p39
      %p46 = scmp.eq.s32.totalorder %s16, 7
      %p47 = por %p45, %p46
      %p48 = scmp.ne.s32.totalorder %s40, %s43
      %p49 = scmp.eq.s32.totalorder %s16, 0
      %p50 = por %p48, %p49
      %p51 = scmp.ne.s32.totalorder %s40, %s43
      %p52 = scmp.eq.s32.totalorder %s21, 7
      %p53 = por %p51, %p52
      %p54 = scmp.ne.s32.totalorder %s43, %s44
      %p55 = scmp.eq.s32.totalorder %s21, 0
      %p56 = por %p54, %p55
      %p57 = scmp.ne.s32.totalorder %s43, %s44
      %p58 = scmp.eq.s32.totalorder %s22, 7
      %p59 = por %p57, %p58
      %p61 = scmp.ne.s32.totalorder %s44, %s60
      %p62 = scmp.eq.s32.totalorder %s22, 0
      %p63 = por %p61, %p62
      %s64 = ssub.s32 %s23, %s35
      %s65 = ssub.s32 %s24, %s31
      %s66 = sor.u32 %s64, %s65
      %p67 = scmp.eq.s32.totalorder %s66, 0
      %s69 = sadd.s32 %s68, 1
      %s70 = scalar_select %p67, %s68, %s69
      %p73 = pneg %p67
      %p74 = scmp.eq.s32.totalorder %s16, 7
      %p75 = por %p73, %p74
      %p76 = scmp.ne.s32.totalorder %s68, %s71
      %p77 = scmp.eq.s32.totalorder %s16, 0
      %p78 = por %p76, %p77
      %p79 = scmp.ne.s32.totalorder %s68, %s71
      %p80 = scmp.eq.s32.totalorder %s21, 7
      %p81 = por %p79, %p80
      %p82 = scmp.ne.s32.totalorder %s71, %s72
      %p83 = scmp.eq.s32.totalorder %s21, 0
      %p84 = por %p82, %p83
      %p85 = scmp.ne.s32.totalorder %s71, %s72
      %p86 = scmp.eq.s32.totalorder %s22, 7
      %p87 = por %p85, %p86
      %p89 = scmp.ne.s32.totalorder %s72, %s88
      %p90 = scmp.eq.s32.totalorder %s22, 0
      %p91 = por %p89, %p90
      %s92 = ssub.s32 %s23, %s35
      %s93 = ssub.s32 %s24, %s31
      %s94 = sor.u32 %s92, %s93
      %p95 = scmp.eq.s32.totalorder %s94, 0
      %s97 = sadd.s32 %s96, 1
      %s98 = scalar_select %p95, %s96, %s97
      %p101 = pneg %p95
      %p102 = scmp.eq.s32.totalorder %s16, 7
      %p103 = por %p101, %p102
      %p104 = scmp.ne.s32.totalorder %s96, %s99
      %p105 = scmp.eq.s32.totalorder %s16, 0
      %p106 = por %p104, %p105
      %p107 = scmp.ne.s32.totalorder %s96, %s99
      %p108 = scmp.eq.s32.totalorder %s21, 7
      %p109 = por %p107, %p108
      %p110 = scmp.ne.s32.totalorder %s99, %s100
      %p111 = scmp.eq.s32.totalorder %s21, 0
      %p112 = por %p110, %p111
      %p113 = scmp.ne.s32.totalorder %s99, %s100
      %p114 = scmp.eq.s32.totalorder %s22, 7
      %p115 = por %p113, %p114
      %p117 = scmp.ne.s32.totalorder %s100, %s116
      %p118 = scmp.eq.s32.totalorder %s22, 0
      %p119 = por %p117, %p118
      %s121 = sadd.s32 %s120, 1
      %p124 = scmp.eq.s32.totalorder %s16, 7
      %p125 = scmp.ne.s32.totalorder %s120, %s122
      %p126 = scmp.eq.s32.totalorder %s16, 0
      %p127 = por %p125, %p126
      %p128 = scmp.ne.s32.totalorder %s120, %s122
      %p129 = scmp.eq.s32.totalorder %s21, 7
      %p130 = por %p128, %p129
      %p131 = scmp.ne.s32.totalorder %s122, %s123
      %p132 = scmp.eq.s32.totalorder %s21, 0
      %p133 = por %p131, %p132
      %p134 = scmp.ne.s32.totalorder %s122, %s123
      %p135 = scmp.eq.s32.totalorder %s22, 7
      %p136 = por %p134, %p135
      %p138 = scmp.ne.s32.totalorder %s123, %s137
      %p139 = scmp.eq.s32.totalorder %s22, 0
      %p140 = por %p138, %p139
      %s142 = sadd.s32 %s141, 1
      %p145 = scmp.eq.s32.totalorder %s16, 7
      %p146 = scmp.ne.s32.totalorder %s141, %s143
      %p147 = scmp.eq.s32.totalorder %s16, 0
      %p148 = por %p146, %p147
      %p149 = scmp.ne.s32.totalorder %s141, %s143
      %p150 = scmp.eq.s32.totalorder %s21, 7
      %p151 = por %p149, %p150
      %p152 = scmp.ne.s32.totalorder %s143, %s144
      %p153 = scmp.eq.s32.totalorder %s21, 0
      %p154 = por %p152, %p153
      %p155 = scmp.ne.s32.totalorder %s143, %s144
      %p156 = scmp.eq.s32.totalorder %s22, 7
      %p157 = por %p155, %p156
      %p159 = scmp.ne.s32.totalorder %s144, %s158
      %p160 = scmp.eq.s32.totalorder %s22, 0
      %p161 = por %p159, %p160
      %s163 = sadd.s32 %s162, 1
      %p166 = scmp.eq.s32.totalorder %s16, 7
      %p167 = scmp.ne.s32.totalorder %s162, %s164
      %p168 = scmp.eq.s32.totalorder %s16, 0
      %p169 = por %p167, %p168
      %p170 = scmp.ne.s32.totalorder %s162, %s164
      %p171 = scmp.eq.s32.totalorder %s21, 7
      %p172 = por %p170, %p171
      %p173 = scmp.ne.s32.totalorder %s164, %s165
      %p174 = scmp.eq.s32.totalorder %s21, 0
      %p175 = por %p173, %p174
      %p176 = scmp.ne.s32.totalorder %s164, %s165
      %p177 = scmp.eq.s32.totalorder %s22, 7
      %p178 = por %p176, %p177
      %p180 = scmp.ne.s32.totalorder %s165, %s179
      %p181 = scmp.eq.s32.totalorder %s22, 0
      %p182 = por %p180, %p181
      %s184 = sadd.s32 %s183, 1
      %p187 = scmp.eq.s32.totalorder %s16, 7
      %p188 = scmp.ne.s32.totalorder %s183, %s185
      %p189 = scmp.eq.s32.totalorder %s16, 0
      %p190 = por %p188, %p189
      %p191 = scmp.ne.s32.totalorder %s183, %s185
      %p192 = scmp.eq.s32.totalorder %s21, 7
      %p193 = por %p191, %p192
      %p194 = scmp.ne.s32.totalorder %s185, %s186
      %p195 = scmp.eq.s32.totalorder %s21, 0
      %p196 = por %p194, %p195
      %p197 = scmp.ne.s32.totalorder %s185, %s186
      %p198 = scmp.eq.s32.totalorder %s22, 7
      %p199 = por %p197, %p198
      %p201 = scmp.ne.s32.totalorder %s186, %s200
      %p202 = scmp.eq.s32.totalorder %s22, 0
      %p203 = por %p201, %p202
      %s204 = ssub.s32 %s23, %s35
      %s205 = ssub.s32 %s24, %s31
      %s206 = sor.u32 %s204, %s205
      %p207 = scmp.eq.s32.totalorder %s206, 0
      %s209 = sadd.s32 %s208, 1
      %s210 = scalar_select %p207, %s208, %s209
      %p213 = pneg %p207
      %p214 = scmp.eq.s32.totalorder %s16, 7
      %p215 = por %p213, %p214
      %p216 = scmp.ne.s32.totalorder %s208, %s211
      %p217 = scmp.eq.s32.totalorder %s16, 0
      %p218 = por %p216, %p217
      %p219 = scmp.ne.s32.totalorder %s208, %s211
      %p220 = scmp.eq.s32.totalorder %s21, 7
      %p221 = por %p219, %p220
      %p222 = scmp.ne.s32.totalorder %s211, %s212
      %p223 = scmp.eq.s32.totalorder %s21, 0
      %p224 = por %p222, %p223
      %p225 = scmp.ne.s32.totalorder %s211, %s212
      %p226 = scmp.eq.s32.totalorder %s22, 7
      %p227 = por %p225, %p226
      %p229 = scmp.ne.s32.totalorder %s212, %s228
      %p230 = scmp.eq.s32.totalorder %s22, 0
      %p231 = por %p229, %p230
      %p232 = scmp.le.s32.totalorder 1, %s16
      %p233 = scmp.lt.s32.totalorder %s16, 9
      %p234 = pnand %p232, %p233
      %p235 = pneg %p234
      // Predicated region
      $region9: #{tpu_custom_call.1} parent=5 // pred_check
        _
      $region10: #{tpu_custom_call.1} parent=5 // pred_check_branch
        %237 = sbr.rel (%p234) target = $region12
      $region11: #{tpu_custom_call.1} parent=5 // pred_region
        %s238 = ssub.s32 %s16, 1
        // Predicated region
        $region13: #{tpu_custom_call.1} parent=11 // pred_check
          %p239 = pneg %p133
        $region14: #{tpu_custom_call.1} parent=11 // pred_check_branch
          %241 = sbr.rel (%p239) target = $region16
        $region15: #{tpu_custom_call.1} parent=11 // pred_region
          _
        $region16: #{tpu_custom_call.1} parent=11 // pred_fallthru
          _
        // Predicated region
        $region17: #{tpu_custom_call.1} parent=11 // pred_check
          %p242 = pneg %p154
        $region18: #{tpu_custom_call.1} parent=11 // pred_check_branch
          %244 = sbr.rel (%p242) target = $region20
        $region19: #{tpu_custom_call.1} parent=11 // pred_region
          _
        $region20: #{tpu_custom_call.1} parent=11 // pred_fallthru
          _
        // Predicated region
        $region21: #{tpu_custom_call.1} parent=11 // pred_check
          %p245 = pneg %p175
        $region22: #{tpu_custom_call.1} parent=11 // pred_check_branch
          %247 = sbr.rel (%p245) target = $region24
        $region23: #{tpu_custom_call.1} parent=11 // pred_region
          _
        $region24: #{tpu_custom_call.1} parent=11 // pred_fallthru
          _
        // Predicated region
        $region25: #{tpu_custom_call.1} parent=11 // pred_check
          %p248 = pneg %p196
        $region26: #{tpu_custom_call.1} parent=11 // pred_check_branch
          %250 = sbr.rel (%p248) target = $region28
        $region27: #{tpu_custom_call.1} parent=11 // pred_region
          _
        $region28: #{tpu_custom_call.1} parent=11 // pred_fallthru
          _
      $region12: #{tpu_custom_call.1} parent=5 // pred_fallthru
        _
      %p251 = scmp.lt.s32.totalorder %s16, 8
      // Predicated region
      $region29: #{tpu_custom_call.1} parent=5 // pred_check
        %p252 = pneg %p251
      $region30: #{tpu_custom_call.1} parent=5 // pred_check_branch
        %254 = sbr.rel (%p252) target = $region32
      $region31: #{tpu_custom_call.1} parent=5 // pred_region
        // Predicated region
        $region33: #{tpu_custom_call.1} parent=31 // pred_check
          %p255 = pneg %p50
        $region34: #{tpu_custom_call.1} parent=31 // pred_check_branch
          %257 = sbr.rel (%p255) target = $region36
        $region35: #{tpu_custom_call.1} parent=31 // pred_region
          %s258 = smul.u32 4, %s24
          %p259 = scmp.lt.s32.totalorder %s23, 1
          %s260 = scalar_select %p259, %s23, 1
          %p261 = scmp.lt.s32.totalorder %s258, 15
          %s262 = scalar_select %p261, %s258, 15
          %s263 = smul.addr %s262, 2
          %s264 = smul.addr %s260, 32
          %s265 = sadd.s32 %s263, %s264
          %s266 = smul.addr %s265, 8
          %s267 = scalar_lea.vmem %s0, %s266
          %s268 = smul.u32 4, %s24
        $region36: #{tpu_custom_call.1} parent=31 // pred_fallthru
          _
        // Predicated region
        $region37: #{tpu_custom_call.1} parent=31 // pred_check
          %p269 = pneg %p78
        $region38: #{tpu_custom_call.1} parent=31 // pred_check_branch
          %271 = sbr.rel (%p269) target = $region40
        $region39: #{tpu_custom_call.1} parent=31 // pred_region
          %p272 = scmp.lt.s32.totalorder %s23, 1
          %s273 = scalar_select %p272, %s23, 1
          %p274 = scmp.lt.s32.totalorder %s24, 3
          %s275 = scalar_select %p274, %s24, 3
          %s276 = smul.addr %s275, 4
          %s277 = smul.addr %s273, 16
          %s278 = sadd.s32 %s276, %s277
          %s279 = smul.addr %s278, 8
          %s280 = scalar_lea.vmem %s1, %s279
        $region40: #{tpu_custom_call.1} parent=31 // pred_fallthru
          _
        // Predicated region
        $region41: #{tpu_custom_call.1} parent=31 // pred_check
          %p281 = pneg %p106
        $region42: #{tpu_custom_call.1} parent=31 // pred_check_branch
          %283 = sbr.rel (%p281) target = $region44
        $region43: #{tpu_custom_call.1} parent=31 // pred_region
          %p284 = scmp.lt.s32.totalorder %s23, 1
          %s285 = scalar_select %p284, %s23, 1
          %p286 = scmp.lt.s32.totalorder %s24, 3
          %s287 = scalar_select %p286, %s24, 3
          %s288 = smul.addr %s287, 4
          %s289 = smul.addr %s285, 16
          %s290 = sadd.s32 %s288, %s289
          %s291 = smul.addr %s290, 8
          %s292 = scalar_lea.vmem %s2, %s291
        $region44: #{tpu_custom_call.1} parent=31 // pred_fallthru
          _
      $region32: #{tpu_custom_call.1} parent=5 // pred_fallthru
        _
      %p293 = scmp.le.s32.totalorder 1, %s16
      %p294 = scmp.lt.s32.totalorder %s16, 9
      %p295 = pnand %p293, %p294
      %p296 = pneg %p295
      // Predicated region
      $region45: #{tpu_custom_call.1} parent=5 // pred_check
        _
      $region46: #{tpu_custom_call.1} parent=5 // pred_check_branch
        %298 = sbr.rel (%p295) target = $region48
      $region47: #{tpu_custom_call.1} parent=5 // pred_region
        %s299 = ssub.s32 %s16, 1
        %s300 = smul.u32 4, %s26
        %p301 = scmp.lt.s32.totalorder %s25, 1
        %s302 = scalar_select %p301, %s25, 1
        %p303 = scmp.lt.s32.totalorder %s300, 15
        %s304 = scalar_select %p303, %s300, 15
        %s305 = smul.addr %s304, 2
        %s306 = smul.addr %s302, 32
        %s307 = sadd.s32 %s305, %s306
        %s308 = smul.addr %s307, 8
        %s309 = scalar_lea.vmem %s0, %s308
        %p310 = pneg %p56
        %p311 = pneg %p53
        %p312 = scmp.lt.s32.totalorder %s25, 1
        %s313 = scalar_select %p312, %s25, 1
        %p314 = scmp.lt.s32.totalorder %s26, 3
        %s315 = scalar_select %p314, %s26, 3
        %s316 = smul.addr %s315, 4
        %s317 = smul.addr %s313, 16
        %s318 = sadd.s32 %s316, %s317
        %s319 = smul.addr %s318, 8
        %s320 = scalar_lea.vmem %s1, %s319
        %p321 = pneg %p84
        %p322 = pneg %p81
        %p323 = scmp.lt.s32.totalorder %s25, 1
        %s324 = scalar_select %p323, %s25, 1
        %p325 = scmp.lt.s32.totalorder %s26, 3
        %s326 = scalar_select %p325, %s26, 3
        %s327 = smul.addr %s326, 4
        %s328 = smul.addr %s324, 16
        %s329 = sadd.s32 %s327, %s328
        %s330 = smul.addr %s329, 8
        %s331 = scalar_lea.vmem %s2, %s330
        %p332 = pneg %p112
        %p333 = pneg %p109
        %p334 = pneg %p133
        %p335 = pneg %p130
        %p336 = pneg %p154
        %p337 = pneg %p151
        %p338 = pneg %p175
        %p339 = pneg %p172
        %p340 = pneg %p196
        %p341 = pneg %p193
        %p342 = pneg %p224
        %p343 = pneg %p221
        %s344 = sand.u32 %s211, 1
        %s345 = scalar_lea.sflag [#allocation4], %s344
        %s346 = sand.u32 %s211, 1
        %s347 = smul.addr %s346, 64
        %s348 = scalar_lea.vmem [#allocation3], %s347
        %s349 = smul.u32 4, %s26
        %p350 = scmp.lt.s32.totalorder %s25, 1
        %s351 = scalar_select %p350, %s25, 1
        %p352 = scmp.lt.s32.totalorder %s349, 15
        %s353 = scalar_select %p352, %s349, 15
        %s354 = smul.addr %s353, 2
        %s355 = smul.addr %s351, 32
        %s356 = sadd.s32 %s354, %s355
        %s357 = smul.addr %s356, 8
        %s358 = scalar_lea.vmem %s0, %s357
        %s359 = smul.u32 4, %s26
        %p360 = scmp.lt.s32.totalorder %s25, 1
        %s361 = scalar_select %p360, %s25, 1
        %p362 = scmp.lt.s32.totalorder %s26, 3
        %s363 = scalar_select %p362, %s26, 3
        %s364 = smul.addr %s363, 4
        %s365 = smul.addr %s361, 16
        %s366 = sadd.s32 %s364, %s365
        %s367 = smul.addr %s366, 8
        %s368 = scalar_lea.vmem %s1, %s367
        %p369 = scmp.lt.s32.totalorder %s25, 1
        %s370 = scalar_select %p369, %s25, 1
        %p371 = scmp.lt.s32.totalorder %s26, 3
        %s372 = scalar_select %p371, %s26, 3
        %s373 = smul.addr %s372, 4
        %s374 = smul.addr %s370, 16
        %s375 = sadd.s32 %s373, %s374
        %s376 = smul.addr %s375, 8
        %s377 = scalar_lea.vmem %s2, %s376
        %s378 = smul.u32 4, %s26
        %v379 = vld [vmem:[%s358] sm:$0xff]
        %v380 = vld [vmem:[%s358 + $0x8] sm:$0xff]
        %v381 = vld [vmem:[%s358 + $0x10] sm:$0xff]
        %v382 = vld [vmem:[%s358 + $0x18] sm:$0xff]
        %v383 = vld [vmem:[%s358 + $0x20] sm:$0xff]
        %v384 = vld [vmem:[%s358 + $0x28] sm:$0xff]
        %v385 = vld [vmem:[%s358 + $0x30] sm:$0xff]
        %v386 = vld [vmem:[%s358 + $0x38] sm:$0xff]
        %v387 = vld [vmem:[%s3] sm:$0xff]
        %v388 = vld [vmem:[%s4] sm:$0x1]
        %v390 = vperm.slane %v388, 0
        %vm392 = vcmask 64512
        %v394 = vsel %vm392, %v379, 0
        %v397 = vsel %vm392, %v380, 0
        %v400 = vsel %vm392, %v381, 0
        %v403 = vsel %vm392, %v382, 0
        %v406 = vsel %vm392, %v383, 0
        %v409 = vsel %vm392, %v384, 0
        %v412 = vsel %vm392, %v385, 0
        %v415 = vsel %vm392, %v386, 0
        %417 = vmatpush.msra.mxu0 0.0
        %418 = vmatpush.msra.mxu0 0.0
        %419 = vmatpush.msra.mxu0 0.0
        %420 = vmatpush.msra.mxu0 0.0
        %421 = vmatpush.msra.mxu0 0.0
        %422 = vmatpush.msra.mxu0 0.0
        %423 = vmatpush.msra.mxu0 0.0
        %424 = vmatpush.msra.mxu0 0.0
        %425 = vmatpush.msra.mxu0 0.0
        %426 = vmatpush.msra.mxu0 0.0
        %427 = vmatpush.msra.mxu0 0.0
        %428 = vmatpush.msra.mxu0 0.0
        %429 = vmatpush.msra.mxu0 0.0
        %430 = vmatpush.msra.mxu0 0.0
        %431 = vmatpush.msra.mxu0 0.0
        %432 = vmatpush.msra.mxu0 %v387
        %433 = vmatmul.f32.gmra.mxu0 %v394
        %v434 = vpop.f32.mrf.mxu0
        %v435 = vadd.f32 %v390, %v434
        %436 = vmatmul.f32.gmra.mxu0 %v397
        %v437 = vpop.f32.mrf.mxu0
        %v438 = vadd.f32 %v390, %v437
        %439 = vmatmul.f32.gmra.mxu0 %v400
        %v440 = vpop.f32.mrf.mxu0
        %v441 = vadd.f32 %v390, %v440
        %442 = vmatmul.f32.gmra.mxu0 %v403
        %v443 = vpop.f32.mrf.mxu0
        %v444 = vadd.f32 %v390, %v443
        %445 = vmatmul.f32.gmra.mxu0 %v406
        %v446 = vpop.f32.mrf.mxu0
        %v447 = vadd.f32 %v390, %v446
        %448 = vmatmul.f32.gmra.mxu0 %v409
        %v449 = vpop.f32.mrf.mxu0
        %v450 = vadd.f32 %v390, %v449
        %451 = vmatmul.f32.gmra.mxu0 %v412
        %v452 = vpop.f32.mrf.mxu0
        %v453 = vadd.f32 %v390, %v452
        %454 = vmatmul.f32.gmra.mxu0 %v415
        %v455 = vpop.f32.mrf.mxu0
        %v456 = vadd.f32 %v390, %v455
        %457 = vdwg.mxu0
        %v458 = vsub.f32 0.0, %v435
        %v459 = vsub.f32 0.0, %v438
        %v460 = vsub.f32 0.0, %v441
        %v461 = vsub.f32 0.0, %v444
        %v462 = vsub.f32 0.0, %v447
        %v463 = vsub.f32 0.0, %v450
        %v464 = vsub.f32 0.0, %v453
        %v465 = vsub.f32 0.0, %v456
        %v466 = vmul.f32 %v458, 1.442695
        %v467 = vpow.pop %v466
        %v468 = vmul.f32 %v459, 1.442695
        %v469 = vpow.pop %v468
        %v470 = vmul.f32 %v460, 1.442695
        %v471 = vpow.pop %v470
        %v472 = vmul.f32 %v461, 1.442695
        %v473 = vpow.pop %v472
        %v474 = vmul.f32 %v462, 1.442695
        %v475 = vpow.pop %v474
        %v476 = vmul.f32 %v463, 1.442695
        %v477 = vpow.pop %v476
        %v478 = vmul.f32 %v464, 1.442695
        %v479 = vpow.pop %v478
        %v480 = vmul.f32 %v465, 1.442695
        %v481 = vpow.pop %v480
        %v482 = vadd.f32 %v467, 1.0
        %v483 = vadd.f32 %v469, 1.0
        %v484 = vadd.f32 %v471, 1.0
        %v485 = vadd.f32 %v473, 1.0
        %v486 = vadd.f32 %v475, 1.0
        %v487 = vadd.f32 %v477, 1.0
        %v488 = vadd.f32 %v479, 1.0
        %v489 = vadd.f32 %v481, 1.0
        %v490 = vrcp.pop %v482
        %v491 = vrcp.pop %v483
        %v492 = vrcp.pop %v484
        %v493 = vrcp.pop %v485
        %v494 = vrcp.pop %v486
        %v495 = vrcp.pop %v487
        %v496 = vrcp.pop %v488
        %v497 = vrcp.pop %v489
        %v498 = vmul.f32 %v435, %v490
        %v499 = vmul.f32 %v438, %v491
        %v500 = vmul.f32 %v441, %v492
        %v501 = vmul.f32 %v444, %v493
        %v502 = vmul.f32 %v447, %v494
        %v503 = vmul.f32 %v450, %v495
        %v504 = vmul.f32 %v453, %v496
        %v505 = vmul.f32 %v456, %v497
        %506 = vst.msk [vmem:[%s348] sm:$0xff] %vm392, %v498
        %507 = vst.msk [vmem:[%s348 + $0x8] sm:$0xff] %vm392, %v499
        %508 = vst.msk [vmem:[%s348 + $0x10] sm:$0xff] %vm392, %v500
        %509 = vst.msk [vmem:[%s348 + $0x18] sm:$0xff] %vm392, %v501
        %510 = vst.msk [vmem:[%s348 + $0x20] sm:$0xff] %vm392, %v502
        %511 = vst.msk [vmem:[%s348 + $0x28] sm:$0xff] %vm392, %v503
        %512 = vst.msk [vmem:[%s348 + $0x30] sm:$0xff] %vm392, %v504
        %513 = vst.msk [vmem:[%s348 + $0x38] sm:$0xff] %vm392, %v505
        %v514 = vld [vmem:[%s368] sm:$0xff]
        %v515 = vld [vmem:[%s368 + $0x8] sm:$0xff]
        %v516 = vld [vmem:[%s368 + $0x10] sm:$0xff]
        %v517 = vld [vmem:[%s368 + $0x18] sm:$0xff]
        %v518 = vld [vmem:[%s3] sm:$0xff]
        %v519 = vld [vmem:[%s4] sm:$0x1]
        %v521 = vperm.slane %v519, 0
        %v524 = vsel %vm392, %v514, 0
        %v527 = vsel %vm392, %v515, 0
        %v530 = vsel %vm392, %v516, 0
        %v533 = vsel %vm392, %v517, 0
        %535 = vmatpush.msra.mxu0 0.0
        %536 = vmatpush.msra.mxu0 0.0
        %537 = vmatpush.msra.mxu0 0.0
        %538 = vmatpush.msra.mxu0 0.0
        %539 = vmatpush.msra.mxu0 0.0
        %540 = vmatpush.msra.mxu0 0.0
        %541 = vmatpush.msra.mxu0 0.0
        %542 = vmatpush.msra.mxu0 0.0
        %543 = vmatpush.msra.mxu0 0.0
        %544 = vmatpush.msra.mxu0 0.0
        %545 = vmatpush.msra.mxu0 0.0
        %546 = vmatpush.msra.mxu0 0.0
        %547 = vmatpush.msra.mxu0 0.0
        %548 = vmatpush.msra.mxu0 0.0
        %549 = vmatpush.msra.mxu0 0.0
        %550 = vmatpush.msra.mxu0 %v518
        %551 = vmatmul.f32.gmra.mxu0 %v524
        %v552 = vpop.f32.mrf.mxu0
        %v553 = vadd.f32 %v521, %v552
        %554 = vmatmul.f32.gmra.mxu0 %v527
        %v555 = vpop.f32.mrf.mxu0
        %v556 = vadd.f32 %v521, %v555
        %557 = vmatmul.f32.gmra.mxu0 %v530
        %v558 = vpop.f32.mrf.mxu0
        %v559 = vadd.f32 %v521, %v558
        %560 = vmatmul.f32.gmra.mxu0 %v533
        %v561 = vpop.f32.mrf.mxu0
        %v562 = vadd.f32 %v521, %v561
        %563 = vdwg.mxu0
        %v564 = vsub.f32 0.0, %v553
        %v565 = vsub.f32 0.0, %v556
        %v566 = vsub.f32 0.0, %v559
        %v567 = vsub.f32 0.0, %v562
        %v568 = vmul.f32 %v564, 1.442695
        %v569 = vpow.pop %v568
        %v570 = vmul.f32 %v565, 1.442695
        %v571 = vpow.pop %v570
        %v572 = vmul.f32 %v566, 1.442695
        %v573 = vpow.pop %v572
        %v574 = vmul.f32 %v567, 1.442695
        %v575 = vpow.pop %v574
        %v576 = vadd.f32 %v569, 1.0
        %v577 = vadd.f32 %v571, 1.0
        %v578 = vadd.f32 %v573, 1.0
        %v579 = vadd.f32 %v575, 1.0
        %v580 = vrcp.pop %v576
        %v581 = vrcp.pop %v577
        %v582 = vrcp.pop %v578
        %v583 = vrcp.pop %v579
        %v584 = vmul.f32 %v553, %v580
        %v585 = vmul.f32 %v556, %v581
        %v586 = vmul.f32 %v559, %v582
        %v587 = vmul.f32 %v562, %v583
        %v588 = vld [vmem:[%s377] sm:$0xff]
        %v589 = vld [vmem:[%s377 + $0x8] sm:$0xff]
        %v590 = vld [vmem:[%s377 + $0x10] sm:$0xff]
        %v591 = vld [vmem:[%s377 + $0x18] sm:$0xff]
        %v593 = vsel %vm392, %v588, 0
        %v596 = vsel %vm392, %v589, 0
        %v599 = vsel %vm392, %v590, 0
        %v602 = vsel %vm392, %v591, 0
        %604 = vmatpush.msra.mxu0 0.0
        %605 = vmatpush.msra.mxu0 0.0
        %606 = vmatpush.msra.mxu0 0.0
        %607 = vmatpush.msra.mxu0 0.0
        %608 = vmatpush.msra.mxu0 0.0
        %609 = vmatpush.msra.mxu0 0.0
        %610 = vmatpush.msra.mxu0 0.0
        %611 = vmatpush.msra.mxu0 0.0
        %612 = vmatpush.msra.mxu0 0.0
        %613 = vmatpush.msra.mxu0 0.0
        %614 = vmatpush.msra.mxu0 0.0
        %615 = vmatpush.msra.mxu0 0.0
        %616 = vmatpush.msra.mxu0 0.0
        %617 = vmatpush.msra.mxu0 0.0
        %618 = vmatpush.msra.mxu0 0.0
        %619 = vmatpush.msra.mxu0 %v518
        %620 = vmatmul.f32.gmra.mxu0 %v593
        %v621 = vpop.f32.mrf.mxu0
        %v622 = vadd.f32 %v521, %v621
        %623 = vmatmul.f32.gmra.mxu0 %v596
        %v624 = vpop.f32.mrf.mxu0
        %v625 = vadd.f32 %v521, %v624
        %626 = vmatmul.f32.gmra.mxu0 %v599
        %v627 = vpop.f32.mrf.mxu0
        %v628 = vadd.f32 %v521, %v627
        %629 = vmatmul.f32.gmra.mxu0 %v602
        %v630 = vpop.f32.mrf.mxu0
        %v631 = vadd.f32 %v521, %v630
        %632 = vdwg.mxu0
        %v633 = vsub.f32 0.0, %v622
        %v634 = vsub.f32 0.0, %v625
        %v635 = vsub.f32 0.0, %v628
        %v636 = vsub.f32 0.0, %v631
        %v637 = vmul.f32 %v633, 1.442695
        %v638 = vpow.pop %v637
        %v639 = vmul.f32 %v634, 1.442695
        %v640 = vpow.pop %v639
        %v641 = vmul.f32 %v635, 1.442695
        %v642 = vpow.pop %v641
        %v643 = vmul.f32 %v636, 1.442695
        %v644 = vpow.pop %v643
        %v645 = vadd.f32 %v638, 1.0
        %v646 = vadd.f32 %v640, 1.0
        %v647 = vadd.f32 %v642, 1.0
        %v648 = vadd.f32 %v644, 1.0
        %v649 = vrcp.pop %v645
        %v650 = vrcp.pop %v646
        %v651 = vrcp.pop %v647
        %v652 = vrcp.pop %v648
        %v653 = vmul.f32 %v622, %v649
        %v654 = vmul.f32 %v625, %v650
        %v655 = vmul.f32 %v628, %v651
        %v656 = vmul.f32 %v631, %v652
        %vm657 = vcmask 58368
        %658 = vst.msk [vmem:[#allocation2] sm:$0x3] %vm657, 0.0
        %659 = vst.msk [vmem:[#allocation2 + $0x18] sm:$0x3] %vm657, 0.0
        %660 = vst.msk [vmem:[#allocation2 + $0x30] sm:$0x3] %vm657, 0.0
        %661 = vst.msk [vmem:[#allocation2 + $0x48] sm:$0x3] %vm657, 0.0
        %662 = vst.msk [vmem:[#allocation2 + $0x60] sm:$0x3] %vm657, 0.0
        %663 = vst.msk [vmem:[#allocation2 + $0x78] sm:$0x3] %vm657, 0.0
        %664 = vst.msk [vmem:[#allocation2 + $0x90] sm:$0x3] %vm657, 0.0
        %665 = vst.msk [vmem:[#allocation2 + $0xa8] sm:$0x3] %vm657, 0.0
        %666 = vst.msk [vmem:[#allocation2 + $0x12] sm:$0x3] %vm657, 0.0
        %667 = vst.msk [vmem:[#allocation2 + $0x2a] sm:$0x3] %vm657, 0.0
        %668 = vst.msk [vmem:[#allocation2 + $0x42] sm:$0x3] %vm657, 0.0
        %669 = vst.msk [vmem:[#allocation2 + $0x5a] sm:$0x3] %vm657, 0.0
        %670 = vst.msk [vmem:[#allocation2 + $0x72] sm:$0x3] %vm657, 0.0
        %671 = vst.msk [vmem:[#allocation2 + $0x8a] sm:$0x3] %vm657, 0.0
        %672 = vst.msk [vmem:[#allocation2 + $0xa2] sm:$0x3] %vm657, 0.0
        %673 = vst.msk [vmem:[#allocation2 + $0xba] sm:$0x3] %vm657, 0.0
        %s674 = scalar_lea.vmem [#allocation2], 48
        %675 = vst.msk [vmem:[%s674 + $0x2] sm:$0xff] %vm392, %v498
        %676 = vst.msk [vmem:[%s674 + $0xa] sm:$0xff] %vm392, %v499
        %677 = vst.msk [vmem:[%s674 + $0x1a] sm:$0xff] %vm392, %v500
        %678 = vst.msk [vmem:[%s674 + $0x22] sm:$0xff] %vm392, %v501
        %679 = vst.msk [vmem:[%s674 + $0x32] sm:$0xff] %vm392, %v502
        %680 = vst.msk [vmem:[%s674 + $0x3a] sm:$0xff] %vm392, %v503
        %681 = vst.msk [vmem:[%s674 + $0x4a] sm:$0xff] %vm392, %v504
        %682 = vst.msk [vmem:[%s674 + $0x52] sm:$0xff] %vm392, %v505
        %683 = vst.msk [vmem:[#allocation2 + $0x2] sm:$0xff] %vm392, %v584
        %684 = vst.msk [vmem:[#allocation2 + $0xa] sm:$0xff] %vm392, %v585
        %685 = vst.msk [vmem:[#allocation2 + $0x1a] sm:$0xff] %vm392, %v586
        %686 = vst.msk [vmem:[#allocation2 + $0x22] sm:$0xff] %vm392, %v587
        %s687 = scalar_lea.vmem [#allocation2], 144
        %688 = vst.msk [vmem:[%s687 + $0x2] sm:$0xff] %vm392, %v653
        %689 = vst.msk [vmem:[%s687 + $0xa] sm:$0xff] %vm392, %v654
        %690 = vst.msk [vmem:[%s687 + $0x1a] sm:$0xff] %vm392, %v655
        %691 = vst.msk [vmem:[%s687 + $0x22] sm:$0xff] %vm392, %v656
        %p692 = scmp.eq.s32.totalorder %s26, 0
        // Predicated region
        $region49: #{tpu_custom_call.1} parent=47 // pred_check
          %p693 = pneg %p692
        $region50: #{tpu_custom_call.1} parent=47 // pred_check_branch
          %695 = sbr.rel (%p693) target = $region52
        $region51: #{tpu_custom_call.1} parent=47 // pred_region
          %696 = vst.msk [vmem:[#allocation2] sm:$0xff] %vm392, 0.0
          %697 = vst.msk [vmem:[#allocation2 + $0x8] sm:$0xff] %vm392, 0.0
          %vm698 = vcmask 60416
          %699 = vst.msk [vmem:[#allocation2 + $0x10] sm:$0xf] %vm698, 0.0
          %700 = vst.msk [vmem:[#allocation2 + $0x18] sm:$0xff] %vm392, 0.0
          %701 = vst.msk [vmem:[#allocation2 + $0x20] sm:$0xff] %vm392, 0.0
          %702 = vst.msk [vmem:[#allocation2 + $0x28] sm:$0xf] %vm698, 0.0
        $region52: #{tpu_custom_call.1} parent=47 // pred_fallthru
          _
        %p703 = scmp.eq.s32.totalorder %s26, 3
        // Predicated region
        $region53: #{tpu_custom_call.1} parent=47 // pred_check
          %p704 = pneg %p703
        $region54: #{tpu_custom_call.1} parent=47 // pred_check_branch
          %706 = sbr.rel (%p704) target = $region56
        $region55: #{tpu_custom_call.1} parent=47 // pred_region
          %707 = vst.msk [vmem:[%s687] sm:$0xff] %vm392, 0.0
          %708 = vst.msk [vmem:[%s687 + $0x8] sm:$0xff] %vm392, 0.0
          %vm709 = vcmask 60416
          %710 = vst.msk [vmem:[%s687 + $0x10] sm:$0xf] %vm709, 0.0
          %711 = vst.msk [vmem:[%s687 + $0x18] sm:$0xff] %vm392, 0.0
          %712 = vst.msk [vmem:[%s687 + $0x20] sm:$0xff] %vm392, 0.0
          %713 = vst.msk [vmem:[%s687 + $0x28] sm:$0xf] %vm709, 0.0
        $region56: #{tpu_custom_call.1} parent=47 // pred_fallthru
          _
        %v714 = vld [vmem:[%s5] sm:$0xff]
        %v715 = vld [vmem:[%s5 + $0x8] sm:$0xff]
        %v716 = vld [vmem:[%s5 + $0x10] sm:$0xff]
        %v717 = vld [vmem:[%s5 + $0x18] sm:$0x1]
        %v718 = vld [vmem:[#allocation2] sm:$0xff]
        %v719 = vld [vmem:[#allocation2 + $0x8] sm:$0xff]
        %v720 = vld [vmem:[#allocation2 + $0x10] sm:$0xf]
        %v721 = vld [vmem:[#allocation2 + $0x18] sm:$0xff]
        %v722 = vld [vmem:[#allocation2 + $0x20] sm:$0xff]
        %v723 = vld [vmem:[#allocation2 + $0x28] sm:$0xf]
        %v724 = vld [vmem:[#allocation2 + $0x30] sm:$0xff]
        %v725 = vld [vmem:[#allocation2 + $0x38] sm:$0xff]
        %v726 = vld [vmem:[#allocation2 + $0x40] sm:$0xf]
        %v727 = vld [vmem:[#allocation2 + $0x48] sm:$0xff]
        %v728 = vld [vmem:[#allocation2 + $0x50] sm:$0xff]
        %v729 = vld [vmem:[#allocation2 + $0x58] sm:$0xf]
        %v730 = vperm.slane %v714, 0
        %v731 = vmul.f32 %v718, %v730
        %v732 = vmul.f32 %v719, %v730
        %v733 = vmul.f32 %v721, %v730
        %v734 = vmul.f32 %v722, %v730
        %v735 = vmul.f32 %v724, %v730
        %v736 = vmul.f32 %v725, %v730
        %v737 = vmul.f32 %v727, %v730
        %v738 = vmul.f32 %v728, %v730
        %v739 = vadd.f32 %v731, 0.0
        %v740 = vadd.f32 %v732, 0.0
        %v741 = vadd.f32 %v733, 0.0
        %v742 = vadd.f32 %v734, 0.0
        %v743 = vadd.f32 %v735, 0.0
        %v744 = vadd.f32 %v736, 0.0
        %v745 = vadd.f32 %v737, 0.0
        %v746 = vadd.f32 %v738, 0.0
        %v747 = vperm.slane %v714, 1
        %v748 = vmul.f32 %v718, %v747
        %v749 = vmul.f32 %v719, %v747
        %v750 = vmul.f32 %v720, %v747
        %v751 = vmul.f32 %v721, %v747
        %v752 = vmul.f32 %v722, %v747
        %v753 = vmul.f32 %v723, %v747
        %v754 = vmul.f32 %v724, %v747
        %v755 = vmul.f32 %v725, %v747
        %v756 = vmul.f32 %v726, %v747
        %v757 = vmul.f32 %v727, %v747
        %v758 = vmul.f32 %v728, %v747
        %v759 = vmul.f32 %v729, %v747
        %vm772 = vcmask 1046528
        %v773 = vrot.slane %v748, 1
        %v774 = vrot.slane %v749, 1
        %v775 = vsel %vm772, %v773, %v774
        %v776 = vrot.slane %v750, 1
        %v777 = vsel %vm772, %v774, %v776
        %v778 = vrot.slane %v751, 1
        %v779 = vrot.slane %v752, 1
        %v780 = vsel %vm772, %v778, %v779
        %v781 = vrot.slane %v753, 1
        %v782 = vsel %vm772, %v779, %v781
        %v783 = vrot.slane %v754, 1
        %v784 = vrot.slane %v755, 1
        %v785 = vsel %vm772, %v783, %v784
        %v786 = vrot.slane %v756, 1
        %v787 = vsel %vm772, %v784, %v786
        %v788 = vrot.slane %v757, 1
        %v789 = vrot.slane %v758, 1
        %v790 = vsel %vm772, %v788, %v789
        %v791 = vrot.slane %v759, 1
        %v792 = vsel %vm772, %v789, %v791
        %v801 = vadd.f32 %v739, %v775
        %v802 = vadd.f32 %v740, %v777
        %v803 = vadd.f32 %v741, %v780
        %v804 = vadd.f32 %v742, %v782
        %v805 = vadd.f32 %v743, %v785
        %v806 = vadd.f32 %v744, %v787
        %v807 = vadd.f32 %v745, %v790
        %v808 = vadd.f32 %v746, %v792
        %v809 = vperm.slane %v714, 2
        %v810 = vmul.f32 %v718, %v809
        %v811 = vmul.f32 %v719, %v809
        %v812 = vmul.f32 %v720, %v809
        %v813 = vmul.f32 %v721, %v809
        %v814 = vmul.f32 %v722, %v809
        %v815 = vmul.f32 %v723, %v809
        %v816 = vmul.f32 %v724, %v809
        %v817 = vmul.f32 %v725, %v809
        %v818 = vmul.f32 %v726, %v809
        %v819 = vmul.f32 %v727, %v809
        %v820 = vmul.f32 %v728, %v809
        %v821 = vmul.f32 %v729, %v809
        %vm834 = vcmask 1045504
        %v835 = vrot.slane %v810, 2
        %v836 = vrot.slane %v811, 2
        %v837 = vsel %vm834, %v835, %v836
        %v838 = vrot.slane %v812, 2
        %v839 = vsel %vm834, %v836, %v838
        %v840 = vrot.slane %v813, 2
        %v841 = vrot.slane %v814, 2
        %v842 = vsel %vm834, %v840, %v841
        %v843 = vrot.slane %v815, 2
        %v844 = vsel %vm834, %v841, %v843
        %v845 = vrot.slane %v816, 2
        %v846 = vrot.slane %v817, 2
        %v847 = vsel %vm834, %v845, %v846
        %v848 = vrot.slane %v818, 2
        %v849 = vsel %vm834, %v846, %v848
        %v850 = vrot.slane %v819, 2
        %v851 = vrot.slane %v820, 2
        %v852 = vsel %vm834, %v850, %v851
        %v853 = vrot.slane %v821, 2
        %v854 = vsel %vm834, %v851, %v853
        %v863 = vadd.f32 %v801, %v837
        %v864 = vadd.f32 %v802, %v839
        %v865 = vadd.f32 %v803, %v842
        %v866 = vadd.f32 %v804, %v844
        %v867 = vadd.f32 %v805, %v847
        %v868 = vadd.f32 %v806, %v849
        %v869 = vadd.f32 %v807, %v852
        %v870 = vadd.f32 %v808, %v854
        %v871 = vperm.slane %v714, 3
        %v872 = vmul.f32 %v718, %v871
        %v873 = vmul.f32 %v719, %v871
        %v874 = vmul.f32 %v720, %v871
        %v875 = vmul.f32 %v721, %v871
        %v876 = vmul.f32 %v722, %v871
        %v877 = vmul.f32 %v723, %v871
        %v878 = vmul.f32 %v724, %v871
        %v879 = vmul.f32 %v725, %v871
        %v880 = vmul.f32 %v726, %v871
        %v881 = vmul.f32 %v727, %v871
        %v882 = vmul.f32 %v728, %v871
        %v883 = vmul.f32 %v729, %v871
        %vm896 = vcmask 1044480
        %v897 = vrot.slane %v872, 3
        %v898 = vrot.slane %v873, 3
        %v899 = vsel %vm896, %v897, %v898
        %v900 = vrot.slane %v874, 3
        %v901 = vsel %vm896, %v898, %v900
        %v902 = vrot.slane %v875, 3
        %v903 = vrot.slane %v876, 3
        %v904 = vsel %vm896, %v902, %v903
        %v905 = vrot.slane %v877, 3
        %v906 = vsel %vm896, %v903, %v905
        %v907 = vrot.slane %v878, 3
        %v908 = vrot.slane %v879, 3
        %v909 = vsel %vm896, %v907, %v908
        %v910 = vrot.slane %v880, 3
        %v911 = vsel %vm896, %v908, %v910
        %v912 = vrot.slane %v881, 3
        %v913 = vrot.slane %v882, 3
        %v914 = vsel %vm896, %v912, %v913
        %v915 = vrot.slane %v883, 3
        %v916 = vsel %vm896, %v913, %v915
        %v925 = vadd.f32 %v863, %v899
        %v926 = vadd.f32 %v864, %v901
        %v927 = vadd.f32 %v865, %v904
        %v928 = vadd.f32 %v866, %v906
        %v929 = vadd.f32 %v867, %v909
        %v930 = vadd.f32 %v868, %v911
        %v931 = vadd.f32 %v869, %v914
        %v932 = vadd.f32 %v870, %v916
        %v933 = vperm.slane %v714, 4
        %v934 = vmul.f32 %v718, %v933
        %v935 = vmul.f32 %v719, %v933
        %v936 = vmul.f32 %v720, %v933
        %v937 = vmul.f32 %v721, %v933
        %v938 = vmul.f32 %v722, %v933
        %v939 = vmul.f32 %v723, %v933
        %v940 = vmul.f32 %v724, %v933
        %v941 = vmul.f32 %v725, %v933
        %v942 = vmul.f32 %v726, %v933
        %v943 = vmul.f32 %v727, %v933
        %v944 = vmul.f32 %v728, %v933
        %v945 = vmul.f32 %v729, %v933
        %vm958 = vcmask 1043456
        %v959 = vrot.slane %v934, 4
        %v960 = vrot.slane %v935, 4
        %v961 = vsel %vm958, %v959, %v960
        %v962 = vrot.slane %v936, 4
        %v963 = vsel %vm958, %v960, %v962
        %v964 = vrot.slane %v937, 4
        %v965 = vrot.slane %v938, 4
        %v966 = vsel %vm958, %v964, %v965
        %v967 = vrot.slane %v939, 4
        %v968 = vsel %vm958, %v965, %v967
        %v969 = vrot.slane %v940, 4
        %v970 = vrot.slane %v941, 4
        %v971 = vsel %vm958, %v969, %v970
        %v972 = vrot.slane %v942, 4
        %v973 = vsel %vm958, %v970, %v972
        %v974 = vrot.slane %v943, 4
        %v975 = vrot.slane %v944, 4
        %v976 = vsel %vm958, %v974, %v975
        %v977 = vrot.slane %v945, 4
        %v978 = vsel %vm958, %v975, %v977
        %v987 = vadd.f32 %v925, %v961
        %v988 = vadd.f32 %v926, %v963
        %v989 = vadd.f32 %v927, %v966
        %v990 = vadd.f32 %v928, %v968
        %v991 = vadd.f32 %v929, %v971
        %v992 = vadd.f32 %v930, %v973
        %v993 = vadd.f32 %v931, %v976
        %v994 = vadd.f32 %v932, %v978
        %s995 = scalar_lea.vmem [#allocation2], 24
        %v996 = vld [vmem:[%s995] sm:$0xff]
        %v997 = vld [vmem:[%s995 + $0x8] sm:$0xff]
        %v998 = vld [vmem:[%s995 + $0x10] sm:$0xf]
        %v999 = vld [vmem:[%s995 + $0x18] sm:$0xff]
        %v1000 = vld [vmem:[%s995 + $0x20] sm:$0xff]
        %v1001 = vld [vmem:[%s995 + $0x28] sm:$0xf]
        %v1002 = vld [vmem:[%s995 + $0x30] sm:$0xff]
        %v1003 = vld [vmem:[%s995 + $0x38] sm:$0xff]
        %v1004 = vld [vmem:[%s995 + $0x40] sm:$0xf]
        %v1005 = vld [vmem:[%s995 + $0x48] sm:$0xff]
        %v1006 = vld [vmem:[%s995 + $0x50] sm:$0xff]
        %v1007 = vld [vmem:[%s995 + $0x58] sm:$0xf]
        %v1008 = vperm.slane %v714, 5
        %v1009 = vmul.f32 %v996, %v1008
        %v1010 = vmul.f32 %v997, %v1008
        %v1011 = vmul.f32 %v999, %v1008
        %v1012 = vmul.f32 %v1000, %v1008
        %v1013 = vmul.f32 %v1002, %v1008
        %v1014 = vmul.f32 %v1003, %v1008
        %v1015 = vmul.f32 %v1005, %v1008
        %v1016 = vmul.f32 %v1006, %v1008
        %v1017 = vadd.f32 %v987, %v1009
        %v1018 = vadd.f32 %v988, %v1010
        %v1019 = vadd.f32 %v989, %v1011
        %v1020 = vadd.f32 %v990, %v1012
        %v1021 = vadd.f32 %v991, %v1013
        %v1022 = vadd.f32 %v992, %v1014
        %v1023 = vadd.f32 %v993, %v1015
        %v1024 = vadd.f32 %v994, %v1016
        %v1025 = vperm.slane %v714, 6
        %v1026 = vmul.f32 %v996, %v1025
        %v1027 = vmul.f32 %v997, %v1025
        %v1028 = vmul.f32 %v998, %v1025
        %v1029 = vmul.f32 %v999, %v1025
        %v1030 = vmul.f32 %v1000, %v1025
        %v1031 = vmul.f32 %v1001, %v1025
        %v1032 = vmul.f32 %v1002, %v1025
        %v1033 = vmul.f32 %v1003, %v1025
        %v1034 = vmul.f32 %v1004, %v1025
        %v1035 = vmul.f32 %v1005, %v1025
        %v1036 = vmul.f32 %v1006, %v1025
        %v1037 = vmul.f32 %v1007, %v1025
        %v1050 = vrot.slane %v1026, 1
        %v1051 = vrot.slane %v1027, 1
        %v1052 = vsel %vm772, %v1050, %v1051
        %v1053 = vrot.slane %v1028, 1
        %v1054 = vsel %vm772, %v1051, %v1053
        %v1055 = vrot.slane %v1029, 1
        %v1056 = vrot.slane %v1030, 1
        %v1057 = vsel %vm772, %v1055, %v1056
        %v1058 = vrot.slane %v1031, 1
        %v1059 = vsel %vm772, %v1056, %v1058
        %v1060 = vrot.slane %v1032, 1
        %v1061 = vrot.slane %v1033, 1
        %v1062 = vsel %vm772, %v1060, %v1061
        %v1063 = vrot.slane %v1034, 1
        %v1064 = vsel %vm772, %v1061, %v1063
        %v1065 = vrot.slane %v1035, 1
        %v1066 = vrot.slane %v1036, 1
        %v1067 = vsel %vm772, %v1065, %v1066
        %v1068 = vrot.slane %v1037, 1
        %v1069 = vsel %vm772, %v1066, %v1068
        %v1078 = vadd.f32 %v1017, %v1052
        %v1079 = vadd.f32 %v1018, %v1054
        %v1080 = vadd.f32 %v1019, %v1057
        %v1081 = vadd.f32 %v1020, %v1059
        %v1082 = vadd.f32 %v1021, %v1062
        %v1083 = vadd.f32 %v1022, %v1064
        %v1084 = vadd.f32 %v1023, %v1067
        %v1085 = vadd.f32 %v1024, %v1069
        %v1086 = vperm.slane %v714, 7
        %v1087 = vmul.f32 %v996, %v1086
        %v1088 = vmul.f32 %v997, %v1086
        %v1089 = vmul.f32 %v998, %v1086
        %v1090 = vmul.f32 %v999, %v1086
        %v1091 = vmul.f32 %v1000, %v1086
        %v1092 = vmul.f32 %v1001, %v1086
        %v1093 = vmul.f32 %v1002, %v1086
        %v1094 = vmul.f32 %v1003, %v1086
        %v1095 = vmul.f32 %v1004, %v1086
        %v1096 = vmul.f32 %v1005, %v1086
        %v1097 = vmul.f32 %v1006, %v1086
        %v1098 = vmul.f32 %v1007, %v1086
        %v1111 = vrot.slane %v1087, 2
        %v1112 = vrot.slane %v1088, 2
        %v1113 = vsel %vm834, %v1111, %v1112
        %v1114 = vrot.slane %v1089, 2
        %v1115 = vsel %vm834, %v1112, %v1114
        %v1116 = vrot.slane %v1090, 2
        %v1117 = vrot.slane %v1091, 2
        %v1118 = vsel %vm834, %v1116, %v1117
        %v1119 = vrot.slane %v1092, 2
        %v1120 = vsel %vm834, %v1117, %v1119
        %v1121 = vrot.slane %v1093, 2
        %v1122 = vrot.slane %v1094, 2
        %v1123 = vsel %vm834, %v1121, %v1122
        %v1124 = vrot.slane %v1095, 2
        %v1125 = vsel %vm834, %v1122, %v1124
        %v1126 = vrot.slane %v1096, 2
        %v1127 = vrot.slane %v1097, 2
        %v1128 = vsel %vm834, %v1126, %v1127
        %v1129 = vrot.slane %v1098, 2
        %v1130 = vsel %vm834, %v1127, %v1129
        %v1139 = vadd.f32 %v1078, %v1113
        %v1140 = vadd.f32 %v1079, %v1115
        %v1141 = vadd.f32 %v1080, %v1118
        %v1142 = vadd.f32 %v1081, %v1120
        %v1143 = vadd.f32 %v1082, %v1123
        %v1144 = vadd.f32 %v1083, %v1125
        %v1145 = vadd.f32 %v1084, %v1128
        %v1146 = vadd.f32 %v1085, %v1130
        %v1147 = vperm.slane %v715, 0
        %v1148 = vmul.f32 %v996, %v1147
        %v1149 = vmul.f32 %v997, %v1147
        %v1150 = vmul.f32 %v998, %v1147
        %v1151 = vmul.f32 %v999, %v1147
        %v1152 = vmul.f32 %v1000, %v1147
        %v1153 = vmul.f32 %v1001, %v1147
        %v1154 = vmul.f32 %v1002, %v1147
        %v1155 = vmul.f32 %v1003, %v1147
        %v1156 = vmul.f32 %v1004, %v1147
        %v1157 = vmul.f32 %v1005, %v1147
        %v1158 = vmul.f32 %v1006, %v1147
        %v1159 = vmul.f32 %v1007, %v1147
        %v1172 = vrot.slane %v1148, 3
        %v1173 = vrot.slane %v1149, 3
        %v1174 = vsel %vm896, %v1172, %v1173
        %v1175 = vrot.slane %v1150, 3
        %v1176 = vsel %vm896, %v1173, %v1175
        %v1177 = vrot.slane %v1151, 3
        %v1178 = vrot.slane %v1152, 3
        %v1179 = vsel %vm896, %v1177, %v1178
        %v1180 = vrot.slane %v1153, 3
        %v1181 = vsel %vm896, %v1178, %v1180
        %v1182 = vrot.slane %v1154, 3
        %v1183 = vrot.slane %v1155, 3
        %v1184 = vsel %vm896, %v1182, %v1183
        %v1185 = vrot.slane %v1156, 3
        %v1186 = vsel %vm896, %v1183, %v1185
        %v1187 = vrot.slane %v1157, 3
        %v1188 = vrot.slane %v1158, 3
        %v1189 = vsel %vm896, %v1187, %v1188
        %v1190 = vrot.slane %v1159, 3
        %v1191 = vsel %vm896, %v1188, %v1190
        %v1200 = vadd.f32 %v1139, %v1174
        %v1201 = vadd.f32 %v1140, %v1176
        %v1202 = vadd.f32 %v1141, %v1179
        %v1203 = vadd.f32 %v1142, %v1181
        %v1204 = vadd.f32 %v1143, %v1184
        %v1205 = vadd.f32 %v1144, %v1186
        %v1206 = vadd.f32 %v1145, %v1189
        %v1207 = vadd.f32 %v1146, %v1191
        %v1208 = vperm.slane %v715, 1
        %v1209 = vmul.f32 %v996, %v1208
        %v1210 = vmul.f32 %v997, %v1208
        %v1211 = vmul.f32 %v998, %v1208
        %v1212 = vmul.f32 %v999, %v1208
        %v1213 = vmul.f32 %v1000, %v1208
        %v1214 = vmul.f32 %v1001, %v1208
        %v1215 = vmul.f32 %v1002, %v1208
        %v1216 = vmul.f32 %v1003, %v1208
        %v1217 = vmul.f32 %v1004, %v1208
        %v1218 = vmul.f32 %v1005, %v1208
        %v1219 = vmul.f32 %v1006, %v1208
        %v1220 = vmul.f32 %v1007, %v1208
        %v1233 = vrot.slane %v1209, 4
        %v1234 = vrot.slane %v1210, 4
        %v1235 = vsel %vm958, %v1233, %v1234
        %v1236 = vrot.slane %v1211, 4
        %v1237 = vsel %vm958, %v1234, %v1236
        %v1238 = vrot.slane %v1212, 4
        %v1239 = vrot.slane %v1213, 4
        %v1240 = vsel %vm958, %v1238, %v1239
        %v1241 = vrot.slane %v1214, 4
        %v1242 = vsel %vm958, %v1239, %v1241
        %v1243 = vrot.slane %v1215, 4
        %v1244 = vrot.slane %v1216, 4
        %v1245 = vsel %vm958, %v1243, %v1244
        %v1246 = vrot.slane %v1217, 4
        %v1247 = vsel %vm958, %v1244, %v1246
        %v1248 = vrot.slane %v1218, 4
        %v1249 = vrot.slane %v1219, 4
        %v1250 = vsel %vm958, %v1248, %v1249
        %v1251 = vrot.slane %v1220, 4
        %v1252 = vsel %vm958, %v1249, %v1251
        %v1261 = vadd.f32 %v1200, %v1235
        %v1262 = vadd.f32 %v1201, %v1237
        %v1263 = vadd.f32 %v1202, %v1240
        %v1264 = vadd.f32 %v1203, %v1242
        %v1265 = vadd.f32 %v1204, %v1245
        %v1266 = vadd.f32 %v1205, %v1247
        %v1267 = vadd.f32 %v1206, %v1250
        %v1268 = vadd.f32 %v1207, %v1252
        %v1269 = vld [vmem:[%s674] sm:$0xff]
        %v1270 = vld [vmem:[%s674 + $0x8] sm:$0xff]
        %v1271 = vld [vmem:[%s674 + $0x10] sm:$0xf]
        %v1272 = vld [vmem:[%s674 + $0x18] sm:$0xff]
        %v1273 = vld [vmem:[%s674 + $0x20] sm:$0xff]
        %v1274 = vld [vmem:[%s674 + $0x28] sm:$0xf]
        %v1275 = vld [vmem:[%s674 + $0x30] sm:$0xff]
        %v1276 = vld [vmem:[%s674 + $0x38] sm:$0xff]
        %v1277 = vld [vmem:[%s674 + $0x40] sm:$0xf]
        %v1278 = vld [vmem:[%s674 + $0x48] sm:$0xff]
        %v1279 = vld [vmem:[%s674 + $0x50] sm:$0xff]
        %v1280 = vld [vmem:[%s674 + $0x58] sm:$0xf]
        %v1281 = vperm.slane %v715, 2
        %v1282 = vmul.f32 %v1269, %v1281
        %v1283 = vmul.f32 %v1270, %v1281
        %v1284 = vmul.f32 %v1272, %v1281
        %v1285 = vmul.f32 %v1273, %v1281
        %v1286 = vmul.f32 %v1275, %v1281
        %v1287 = vmul.f32 %v1276, %v1281
        %v1288 = vmul.f32 %v1278, %v1281
        %v1289 = vmul.f32 %v1279, %v1281
        %v1290 = vadd.f32 %v1261, %v1282
        %v1291 = vadd.f32 %v1262, %v1283
        %v1292 = vadd.f32 %v1263, %v1284
        %v1293 = vadd.f32 %v1264, %v1285
        %v1294 = vadd.f32 %v1265, %v1286
        %v1295 = vadd.f32 %v1266, %v1287
        %v1296 = vadd.f32 %v1267, %v1288
        %v1297 = vadd.f32 %v1268, %v1289
        %v1298 = vperm.slane %v715, 3
        %v1299 = vmul.f32 %v1269, %v1298
        %v1300 = vmul.f32 %v1270, %v1298
        %v1301 = vmul.f32 %v1271, %v1298
        %v1302 = vmul.f32 %v1272, %v1298
        %v1303 = vmul.f32 %v1273, %v1298
        %v1304 = vmul.f32 %v1274, %v1298
        %v1305 = vmul.f32 %v1275, %v1298
        %v1306 = vmul.f32 %v1276, %v1298
        %v1307 = vmul.f32 %v1277, %v1298
        %v1308 = vmul.f32 %v1278, %v1298
        %v1309 = vmul.f32 %v1279, %v1298
        %v1310 = vmul.f32 %v1280, %v1298
        %v1323 = vrot.slane %v1299, 1
        %v1324 = vrot.slane %v1300, 1
        %v1325 = vsel %vm772, %v1323, %v1324
        %v1326 = vrot.slane %v1301, 1
        %v1327 = vsel %vm772, %v1324, %v1326
        %v1328 = vrot.slane %v1302, 1
        %v1329 = vrot.slane %v1303, 1
        %v1330 = vsel %vm772, %v1328, %v1329
        %v1331 = vrot.slane %v1304, 1
        %v1332 = vsel %vm772, %v1329, %v1331
        %v1333 = vrot.slane %v1305, 1
        %v1334 = vrot.slane %v1306, 1
        %v1335 = vsel %vm772, %v1333, %v1334
        %v1336 = vrot.slane %v1307, 1
        %v1337 = vsel %vm772, %v1334, %v1336
        %v1338 = vrot.slane %v1308, 1
        %v1339 = vrot.slane %v1309, 1
        %v1340 = vsel %vm772, %v1338, %v1339
        %v1341 = vrot.slane %v1310, 1
        %v1342 = vsel %vm772, %v1339, %v1341
        %v1351 = vadd.f32 %v1290, %v1325
        %v1352 = vadd.f32 %v1291, %v1327
        %v1353 = vadd.f32 %v1292, %v1330
        %v1354 = vadd.f32 %v1293, %v1332
        %v1355 = vadd.f32 %v1294, %v1335
        %v1356 = vadd.f32 %v1295, %v1337
        %v1357 = vadd.f32 %v1296, %v1340
        %v1358 = vadd.f32 %v1297, %v1342
        %v1359 = vperm.slane %v715, 4
        %v1360 = vmul.f32 %v1269, %v1359
        %v1361 = vmul.f32 %v1270, %v1359
        %v1362 = vmul.f32 %v1271, %v1359
        %v1363 = vmul.f32 %v1272, %v1359
        %v1364 = vmul.f32 %v1273, %v1359
        %v1365 = vmul.f32 %v1274, %v1359
        %v1366 = vmul.f32 %v1275, %v1359
        %v1367 = vmul.f32 %v1276, %v1359
        %v1368 = vmul.f32 %v1277, %v1359
        %v1369 = vmul.f32 %v1278, %v1359
        %v1370 = vmul.f32 %v1279, %v1359
        %v1371 = vmul.f32 %v1280, %v1359
        %v1384 = vrot.slane %v1360, 2
        %v1385 = vrot.slane %v1361, 2
        %v1386 = vsel %vm834, %v1384, %v1385
        %v1387 = vrot.slane %v1362, 2
        %v1388 = vsel %vm834, %v1385, %v1387
        %v1389 = vrot.slane %v1363, 2
        %v1390 = vrot.slane %v1364, 2
        %v1391 = vsel %vm834, %v1389, %v1390
        %v1392 = vrot.slane %v1365, 2
        %v1393 = vsel %vm834, %v1390, %v1392
        %v1394 = vrot.slane %v1366, 2
        %v1395 = vrot.slane %v1367, 2
        %v1396 = vsel %vm834, %v1394, %v1395
        %v1397 = vrot.slane %v1368, 2
        %v1398 = vsel %vm834, %v1395, %v1397
        %v1399 = vrot.slane %v1369, 2
        %v1400 = vrot.slane %v1370, 2
        %v1401 = vsel %vm834, %v1399, %v1400
        %v1402 = vrot.slane %v1371, 2
        %v1403 = vsel %vm834, %v1400, %v1402
        %v1412 = vadd.f32 %v1351, %v1386
        %v1413 = vadd.f32 %v1352, %v1388
        %v1414 = vadd.f32 %v1353, %v1391
        %v1415 = vadd.f32 %v1354, %v1393
        %v1416 = vadd.f32 %v1355, %v1396
        %v1417 = vadd.f32 %v1356, %v1398
        %v1418 = vadd.f32 %v1357, %v1401
        %v1419 = vadd.f32 %v1358, %v1403
        %v1420 = vperm.slane %v715, 5
        %v1421 = vmul.f32 %v1269, %v1420
        %v1422 = vmul.f32 %v1270, %v1420
        %v1423 = vmul.f32 %v1271, %v1420
        %v1424 = vmul.f32 %v1272, %v1420
        %v1425 = vmul.f32 %v1273, %v1420
        %v1426 = vmul.f32 %v1274, %v1420
        %v1427 = vmul.f32 %v1275, %v1420
        %v1428 = vmul.f32 %v1276, %v1420
        %v1429 = vmul.f32 %v1277, %v1420
        %v1430 = vmul.f32 %v1278, %v1420
        %v1431 = vmul.f32 %v1279, %v1420
        %v1432 = vmul.f32 %v1280, %v1420
        %v1445 = vrot.slane %v1421, 3
        %v1446 = vrot.slane %v1422, 3
        %v1447 = vsel %vm896, %v1445, %v1446
        %v1448 = vrot.slane %v1423, 3
        %v1449 = vsel %vm896, %v1446, %v1448
        %v1450 = vrot.slane %v1424, 3
        %v1451 = vrot.slane %v1425, 3
        %v1452 = vsel %vm896, %v1450, %v1451
        %v1453 = vrot.slane %v1426, 3
        %v1454 = vsel %vm896, %v1451, %v1453
        %v1455 = vrot.slane %v1427, 3
        %v1456 = vrot.slane %v1428, 3
        %v1457 = vsel %vm896, %v1455, %v1456
        %v1458 = vrot.slane %v1429, 3
        %v1459 = vsel %vm896, %v1456, %v1458
        %v1460 = vrot.slane %v1430, 3
        %v1461 = vrot.slane %v1431, 3
        %v1462 = vsel %vm896, %v1460, %v1461
        %v1463 = vrot.slane %v1432, 3
        %v1464 = vsel %vm896, %v1461, %v1463
        %v1473 = vadd.f32 %v1412, %v1447
        %v1474 = vadd.f32 %v1413, %v1449
        %v1475 = vadd.f32 %v1414, %v1452
        %v1476 = vadd.f32 %v1415, %v1454
        %v1477 = vadd.f32 %v1416, %v1457
        %v1478 = vadd.f32 %v1417, %v1459
        %v1479 = vadd.f32 %v1418, %v1462
        %v1480 = vadd.f32 %v1419, %v1464
        %v1481 = vperm.slane %v715, 6
        %v1482 = vmul.f32 %v1269, %v1481
        %v1483 = vmul.f32 %v1270, %v1481
        %v1484 = vmul.f32 %v1271, %v1481
        %v1485 = vmul.f32 %v1272, %v1481
        %v1486 = vmul.f32 %v1273, %v1481
        %v1487 = vmul.f32 %v1274, %v1481
        %v1488 = vmul.f32 %v1275, %v1481
        %v1489 = vmul.f32 %v1276, %v1481
        %v1490 = vmul.f32 %v1277, %v1481
        %v1491 = vmul.f32 %v1278, %v1481
        %v1492 = vmul.f32 %v1279, %v1481
        %v1493 = vmul.f32 %v1280, %v1481
        %v1506 = vrot.slane %v1482, 4
        %v1507 = vrot.slane %v1483, 4
        %v1508 = vsel %vm958, %v1506, %v1507
        %v1509 = vrot.slane %v1484, 4
        %v1510 = vsel %vm958, %v1507, %v1509
        %v1511 = vrot.slane %v1485, 4
        %v1512 = vrot.slane %v1486, 4
        %v1513 = vsel %vm958, %v1511, %v1512
        %v1514 = vrot.slane %v1487, 4
        %v1515 = vsel %vm958, %v1512, %v1514
        %v1516 = vrot.slane %v1488, 4
        %v1517 = vrot.slane %v1489, 4
        %v1518 = vsel %vm958, %v1516, %v1517
        %v1519 = vrot.slane %v1490, 4
        %v1520 = vsel %vm958, %v1517, %v1519
        %v1521 = vrot.slane %v1491, 4
        %v1522 = vrot.slane %v1492, 4
        %v1523 = vsel %vm958, %v1521, %v1522
        %v1524 = vrot.slane %v1493, 4
        %v1525 = vsel %vm958, %v1522, %v1524
        %v1534 = vadd.f32 %v1473, %v1508
        %v1535 = vadd.f32 %v1474, %v1510
        %v1536 = vadd.f32 %v1475, %v1513
        %v1537 = vadd.f32 %v1476, %v1515
        %v1538 = vadd.f32 %v1477, %v1518
        %v1539 = vadd.f32 %v1478, %v1520
        %v1540 = vadd.f32 %v1479, %v1523
        %v1541 = vadd.f32 %v1480, %v1525
        %s1542 = scalar_lea.vmem [#allocation2], 72
        %v1543 = vld [vmem:[%s1542] sm:$0xff]
        %v1544 = vld [vmem:[%s1542 + $0x8] sm:$0xff]
        %v1545 = vld [vmem:[%s1542 + $0x10] sm:$0xf]
        %v1546 = vld [vmem:[%s1542 + $0x18] sm:$0xff]
        %v1547 = vld [vmem:[%s1542 + $0x20] sm:$0xff]
        %v1548 = vld [vmem:[%s1542 + $0x28] sm:$0xf]
        %v1549 = vld [vmem:[%s1542 + $0x30] sm:$0xff]
        %v1550 = vld [vmem:[%s1542 + $0x38] sm:$0xff]
        %v1551 = vld [vmem:[%s1542 + $0x40] sm:$0xf]
        %v1552 = vld [vmem:[%s1542 + $0x48] sm:$0xff]
        %v1553 = vld [vmem:[%s1542 + $0x50] sm:$0xff]
        %v1554 = vld [vmem:[%s1542 + $0x58] sm:$0xf]
        %v1555 = vperm.slane %v715, 7
        %v1556 = vmul.f32 %v1543, %v1555
        %v1557 = vmul.f32 %v1544, %v1555
        %v1558 = vmul.f32 %v1546, %v1555
        %v1559 = vmul.f32 %v1547, %v1555
        %v1560 = vmul.f32 %v1549, %v1555
        %v1561 = vmul.f32 %v1550, %v1555
        %v1562 = vmul.f32 %v1552, %v1555
        %v1563 = vmul.f32 %v1553, %v1555
        %v1564 = vadd.f32 %v1534, %v1556
        %v1565 = vadd.f32 %v1535, %v1557
        %v1566 = vadd.f32 %v1536, %v1558
        %v1567 = vadd.f32 %v1537, %v1559
        %v1568 = vadd.f32 %v1538, %v1560
        %v1569 = vadd.f32 %v1539, %v1561
        %v1570 = vadd.f32 %v1540, %v1562
        %v1571 = vadd.f32 %v1541, %v1563
        %v1572 = vperm.slane %v716, 0
        %v1573 = vmul.f32 %v1543, %v1572
        %v1574 = vmul.f32 %v1544, %v1572
        %v1575 = vmul.f32 %v1545, %v1572
        %v1576 = vmul.f32 %v1546, %v1572
        %v1577 = vmul.f32 %v1547, %v1572
        %v1578 = vmul.f32 %v1548, %v1572
        %v1579 = vmul.f32 %v1549, %v1572
        %v1580 = vmul.f32 %v1550, %v1572
        %v1581 = vmul.f32 %v1551, %v1572
        %v1582 = vmul.f32 %v1552, %v1572
        %v1583 = vmul.f32 %v1553, %v1572
        %v1584 = vmul.f32 %v1554, %v1572
        %v1597 = vrot.slane %v1573, 1
        %v1598 = vrot.slane %v1574, 1
        %v1599 = vsel %vm772, %v1597, %v1598
        %v1600 = vrot.slane %v1575, 1
        %v1601 = vsel %vm772, %v1598, %v1600
        %v1602 = vrot.slane %v1576, 1
        %v1603 = vrot.slane %v1577, 1
        %v1604 = vsel %vm772, %v1602, %v1603
        %v1605 = vrot.slane %v1578, 1
        %v1606 = vsel %vm772, %v1603, %v1605
        %v1607 = vrot.slane %v1579, 1
        %v1608 = vrot.slane %v1580, 1
        %v1609 = vsel %vm772, %v1607, %v1608
        %v1610 = vrot.slane %v1581, 1
        %v1611 = vsel %vm772, %v1608, %v1610
        %v1612 = vrot.slane %v1582, 1
        %v1613 = vrot.slane %v1583, 1
        %v1614 = vsel %vm772, %v1612, %v1613
        %v1615 = vrot.slane %v1584, 1
        %v1616 = vsel %vm772, %v1613, %v1615
        %v1625 = vadd.f32 %v1564, %v1599
        %v1626 = vadd.f32 %v1565, %v1601
        %v1627 = vadd.f32 %v1566, %v1604
        %v1628 = vadd.f32 %v1567, %v1606
        %v1629 = vadd.f32 %v1568, %v1609
        %v1630 = vadd.f32 %v1569, %v1611
        %v1631 = vadd.f32 %v1570, %v1614
        %v1632 = vadd.f32 %v1571, %v1616
        %v1633 = vperm.slane %v716, 1
        %v1634 = vmul.f32 %v1543, %v1633
        %v1635 = vmul.f32 %v1544, %v1633
        %v1636 = vmul.f32 %v1545, %v1633
        %v1637 = vmul.f32 %v1546, %v1633
        %v1638 = vmul.f32 %v1547, %v1633
        %v1639 = vmul.f32 %v1548, %v1633
        %v1640 = vmul.f32 %v1549, %v1633
        %v1641 = vmul.f32 %v1550, %v1633
        %v1642 = vmul.f32 %v1551, %v1633
        %v1643 = vmul.f32 %v1552, %v1633
        %v1644 = vmul.f32 %v1553, %v1633
        %v1645 = vmul.f32 %v1554, %v1633
        %v1658 = vrot.slane %v1634, 2
        %v1659 = vrot.slane %v1635, 2
        %v1660 = vsel %vm834, %v1658, %v1659
        %v1661 = vrot.slane %v1636, 2
        %v1662 = vsel %vm834, %v1659, %v1661
        %v1663 = vrot.slane %v1637, 2
        %v1664 = vrot.slane %v1638, 2
        %v1665 = vsel %vm834, %v1663, %v1664
        %v1666 = vrot.slane %v1639, 2
        %v1667 = vsel %vm834, %v1664, %v1666
        %v1668 = vrot.slane %v1640, 2
        %v1669 = vrot.slane %v1641, 2
        %v1670 = vsel %vm834, %v1668, %v1669
        %v1671 = vrot.slane %v1642, 2
        %v1672 = vsel %vm834, %v1669, %v1671
        %v1673 = vrot.slane %v1643, 2
        %v1674 = vrot.slane %v1644, 2
        %v1675 = vsel %vm834, %v1673, %v1674
        %v1676 = vrot.slane %v1645, 2
        %v1677 = vsel %vm834, %v1674, %v1676
        %v1686 = vadd.f32 %v1625, %v1660
        %v1687 = vadd.f32 %v1626, %v1662
        %v1688 = vadd.f32 %v1627, %v1665
        %v1689 = vadd.f32 %v1628, %v1667
        %v1690 = vadd.f32 %v1629, %v1670
        %v1691 = vadd.f32 %v1630, %v1672
        %v1692 = vadd.f32 %v1631, %v1675
        %v1693 = vadd.f32 %v1632, %v1677
        %v1694 = vperm.slane %v716, 2
        %v1695 = vmul.f32 %v1543, %v1694
        %v1696 = vmul.f32 %v1544, %v1694
        %v1697 = vmul.f32 %v1545, %v1694
        %v1698 = vmul.f32 %v1546, %v1694
        %v1699 = vmul.f32 %v1547, %v1694
        %v1700 = vmul.f32 %v1548, %v1694
        %v1701 = vmul.f32 %v1549, %v1694
        %v1702 = vmul.f32 %v1550, %v1694
        %v1703 = vmul.f32 %v1551, %v1694
        %v1704 = vmul.f32 %v1552, %v1694
        %v1705 = vmul.f32 %v1553, %v1694
        %v1706 = vmul.f32 %v1554, %v1694
        %v1719 = vrot.slane %v1695, 3
        %v1720 = vrot.slane %v1696, 3
        %v1721 = vsel %vm896, %v1719, %v1720
        %v1722 = vrot.slane %v1697, 3
        %v1723 = vsel %vm896, %v1720, %v1722
        %v1724 = vrot.slane %v1698, 3
        %v1725 = vrot.slane %v1699, 3
        %v1726 = vsel %vm896, %v1724, %v1725
        %v1727 = vrot.slane %v1700, 3
        %v1728 = vsel %vm896, %v1725, %v1727
        %v1729 = vrot.slane %v1701, 3
        %v1730 = vrot.slane %v1702, 3
        %v1731 = vsel %vm896, %v1729, %v1730
        %v1732 = vrot.slane %v1703, 3
        %v1733 = vsel %vm896, %v1730, %v1732
        %v1734 = vrot.slane %v1704, 3
        %v1735 = vrot.slane %v1705, 3
        %v1736 = vsel %vm896, %v1734, %v1735
        %v1737 = vrot.slane %v1706, 3
        %v1738 = vsel %vm896, %v1735, %v1737
        %v1747 = vadd.f32 %v1686, %v1721
        %v1748 = vadd.f32 %v1687, %v1723
        %v1749 = vadd.f32 %v1688, %v1726
        %v1750 = vadd.f32 %v1689, %v1728
        %v1751 = vadd.f32 %v1690, %v1731
        %v1752 = vadd.f32 %v1691, %v1733
        %v1753 = vadd.f32 %v1692, %v1736
        %v1754 = vadd.f32 %v1693, %v1738
        %v1755 = vperm.slane %v716, 3
        %v1756 = vmul.f32 %v1543, %v1755
        %v1757 = vmul.f32 %v1544, %v1755
        %v1758 = vmul.f32 %v1545, %v1755
        %v1759 = vmul.f32 %v1546, %v1755
        %v1760 = vmul.f32 %v1547, %v1755
        %v1761 = vmul.f32 %v1548, %v1755
        %v1762 = vmul.f32 %v1549, %v1755
        %v1763 = vmul.f32 %v1550, %v1755
        %v1764 = vmul.f32 %v1551, %v1755
        %v1765 = vmul.f32 %v1552, %v1755
        %v1766 = vmul.f32 %v1553, %v1755
        %v1767 = vmul.f32 %v1554, %v1755
        %v1780 = vrot.slane %v1756, 4
        %v1781 = vrot.slane %v1757, 4
        %v1782 = vsel %vm958, %v1780, %v1781
        %v1783 = vrot.slane %v1758, 4
        %v1784 = vsel %vm958, %v1781, %v1783
        %v1785 = vrot.slane %v1759, 4
        %v1786 = vrot.slane %v1760, 4
        %v1787 = vsel %vm958, %v1785, %v1786
        %v1788 = vrot.slane %v1761, 4
        %v1789 = vsel %vm958, %v1786, %v1788
        %v1790 = vrot.slane %v1762, 4
        %v1791 = vrot.slane %v1763, 4
        %v1792 = vsel %vm958, %v1790, %v1791
        %v1793 = vrot.slane %v1764, 4
        %v1794 = vsel %vm958, %v1791, %v1793
        %v1795 = vrot.slane %v1765, 4
        %v1796 = vrot.slane %v1766, 4
        %v1797 = vsel %vm958, %v1795, %v1796
        %v1798 = vrot.slane %v1767, 4
        %v1799 = vsel %vm958, %v1796, %v1798
        %v1808 = vadd.f32 %v1747, %v1782
        %v1809 = vadd.f32 %v1748, %v1784
        %v1810 = vadd.f32 %v1749, %v1787
        %v1811 = vadd.f32 %v1750, %v1789
        %v1812 = vadd.f32 %v1751, %v1792
        %v1813 = vadd.f32 %v1752, %v1794
        %v1814 = vadd.f32 %v1753, %v1797
        %v1815 = vadd.f32 %v1754, %v1799
        %s1816 = scalar_lea.vmem [#allocation2], 96
        %v1817 = vld [vmem:[%s1816] sm:$0xff]
        %v1818 = vld [vmem:[%s1816 + $0x8] sm:$0xff]
        %v1819 = vld [vmem:[%s1816 + $0x10] sm:$0xf]
        %v1820 = vld [vmem:[%s1816 + $0x18] sm:$0xff]
        %v1821 = vld [vmem:[%s1816 + $0x20] sm:$0xff]
        %v1822 = vld [vmem:[%s1816 + $0x28] sm:$0xf]
        %v1823 = vld [vmem:[%s1816 + $0x30] sm:$0xff]
        %v1824 = vld [vmem:[%s1816 + $0x38] sm:$0xff]
        %v1825 = vld [vmem:[%s1816 + $0x40] sm:$0xf]
        %v1826 = vld [vmem:[%s1816 + $0x48] sm:$0xff]
        %v1827 = vld [vmem:[%s1816 + $0x50] sm:$0xff]
        %v1828 = vld [vmem:[%s1816 + $0x58] sm:$0xf]
        %v1829 = vperm.slane %v716, 4
        %v1830 = vmul.f32 %v1817, %v1829
        %v1831 = vmul.f32 %v1818, %v1829
        %v1832 = vmul.f32 %v1820, %v1829
        %v1833 = vmul.f32 %v1821, %v1829
        %v1834 = vmul.f32 %v1823, %v1829
        %v1835 = vmul.f32 %v1824, %v1829
        %v1836 = vmul.f32 %v1826, %v1829
        %v1837 = vmul.f32 %v1827, %v1829
        %v1838 = vadd.f32 %v1808, %v1830
        %v1839 = vadd.f32 %v1809, %v1831
        %v1840 = vadd.f32 %v1810, %v1832
        %v1841 = vadd.f32 %v1811, %v1833
        %v1842 = vadd.f32 %v1812, %v1834
        %v1843 = vadd.f32 %v1813, %v1835
        %v1844 = vadd.f32 %v1814, %v1836
        %v1845 = vadd.f32 %v1815, %v1837
        %v1846 = vperm.slane %v716, 5
        %v1847 = vmul.f32 %v1817, %v1846
        %v1848 = vmul.f32 %v1818, %v1846
        %v1849 = vmul.f32 %v1819, %v1846
        %v1850 = vmul.f32 %v1820, %v1846
        %v1851 = vmul.f32 %v1821, %v1846
        %v1852 = vmul.f32 %v1822, %v1846
        %v1853 = vmul.f32 %v1823, %v1846
        %v1854 = vmul.f32 %v1824, %v1846
        %v1855 = vmul.f32 %v1825, %v1846
        %v1856 = vmul.f32 %v1826, %v1846
        %v1857 = vmul.f32 %v1827, %v1846
        %v1858 = vmul.f32 %v1828, %v1846
        %v1871 = vrot.slane %v1847, 1
        %v1872 = vrot.slane %v1848, 1
        %v1873 = vsel %vm772, %v1871, %v1872
        %v1874 = vrot.slane %v1849, 1
        %v1875 = vsel %vm772, %v1872, %v1874
        %v1876 = vrot.slane %v1850, 1
        %v1877 = vrot.slane %v1851, 1
        %v1878 = vsel %vm772, %v1876, %v1877
        %v1879 = vrot.slane %v1852, 1
        %v1880 = vsel %vm772, %v1877, %v1879
        %v1881 = vrot.slane %v1853, 1
        %v1882 = vrot.slane %v1854, 1
        %v1883 = vsel %vm772, %v1881, %v1882
        %v1884 = vrot.slane %v1855, 1
        %v1885 = vsel %vm772, %v1882, %v1884
        %v1886 = vrot.slane %v1856, 1
        %v1887 = vrot.slane %v1857, 1
        %v1888 = vsel %vm772, %v1886, %v1887
        %v1889 = vrot.slane %v1858, 1
        %v1890 = vsel %vm772, %v1887, %v1889
        %v1899 = vadd.f32 %v1838, %v1873
        %v1900 = vadd.f32 %v1839, %v1875
        %v1901 = vadd.f32 %v1840, %v1878
        %v1902 = vadd.f32 %v1841, %v1880
        %v1903 = vadd.f32 %v1842, %v1883
        %v1904 = vadd.f32 %v1843, %v1885
        %v1905 = vadd.f32 %v1844, %v1888
        %v1906 = vadd.f32 %v1845, %v1890
        %v1907 = vperm.slane %v716, 6
        %v1908 = vmul.f32 %v1817, %v1907
        %v1909 = vmul.f32 %v1818, %v1907
        %v1910 = vmul.f32 %v1819, %v1907
        %v1911 = vmul.f32 %v1820, %v1907
        %v1912 = vmul.f32 %v1821, %v1907
        %v1913 = vmul.f32 %v1822, %v1907
        %v1914 = vmul.f32 %v1823, %v1907
        %v1915 = vmul.f32 %v1824, %v1907
        %v1916 = vmul.f32 %v1825, %v1907
        %v1917 = vmul.f32 %v1826, %v1907
        %v1918 = vmul.f32 %v1827, %v1907
        %v1919 = vmul.f32 %v1828, %v1907
        %v1932 = vrot.slane %v1908, 2
        %v1933 = vrot.slane %v1909, 2
        %v1934 = vsel %vm834, %v1932, %v1933
        %v1935 = vrot.slane %v1910, 2
        %v1936 = vsel %vm834, %v1933, %v1935
        %v1937 = vrot.slane %v1911, 2
        %v1938 = vrot.slane %v1912, 2
        %v1939 = vsel %vm834, %v1937, %v1938
        %v1940 = vrot.slane %v1913, 2
        %v1941 = vsel %vm834, %v1938, %v1940
        %v1942 = vrot.slane %v1914, 2
        %v1943 = vrot.slane %v1915, 2
        %v1944 = vsel %vm834, %v1942, %v1943
        %v1945 = vrot.slane %v1916, 2
        %v1946 = vsel %vm834, %v1943, %v1945
        %v1947 = vrot.slane %v1917, 2
        %v1948 = vrot.slane %v1918, 2
        %v1949 = vsel %vm834, %v1947, %v1948
        %v1950 = vrot.slane %v1919, 2
        %v1951 = vsel %vm834, %v1948, %v1950
        %v1960 = vadd.f32 %v1899, %v1934
        %v1961 = vadd.f32 %v1900, %v1936
        %v1962 = vadd.f32 %v1901, %v1939
        %v1963 = vadd.f32 %v1902, %v1941
        %v1964 = vadd.f32 %v1903, %v1944
        %v1965 = vadd.f32 %v1904, %v1946
        %v1966 = vadd.f32 %v1905, %v1949
        %v1967 = vadd.f32 %v1906, %v1951
        %v1968 = vperm.slane %v716, 7
        %v1969 = vmul.f32 %v1817, %v1968
        %v1970 = vmul.f32 %v1818, %v1968
        %v1971 = vmul.f32 %v1819, %v1968
        %v1972 = vmul.f32 %v1820, %v1968
        %v1973 = vmul.f32 %v1821, %v1968
        %v1974 = vmul.f32 %v1822, %v1968
        %v1975 = vmul.f32 %v1823, %v1968
        %v1976 = vmul.f32 %v1824, %v1968
        %v1977 = vmul.f32 %v1825, %v1968
        %v1978 = vmul.f32 %v1826, %v1968
        %v1979 = vmul.f32 %v1827, %v1968
        %v1980 = vmul.f32 %v1828, %v1968
        %v1993 = vrot.slane %v1969, 3
        %v1994 = vrot.slane %v1970, 3
        %v1995 = vsel %vm896, %v1993, %v1994
        %v1996 = vrot.slane %v1971, 3
        %v1997 = vsel %vm896, %v1994, %v1996
        %v1998 = vrot.slane %v1972, 3
        %v1999 = vrot.slane %v1973, 3
        %v2000 = vsel %vm896, %v1998, %v1999
        %v2001 = vrot.slane %v1974, 3
        %v2002 = vsel %vm896, %v1999, %v2001
        %v2003 = vrot.slane %v1975, 3
        %v2004 = vrot.slane %v1976, 3
        %v2005 = vsel %vm896, %v2003, %v2004
        %v2006 = vrot.slane %v1977, 3
        %v2007 = vsel %vm896, %v2004, %v2006
        %v2008 = vrot.slane %v1978, 3
        %v2009 = vrot.slane %v1979, 3
        %v2010 = vsel %vm896, %v2008, %v2009
        %v2011 = vrot.slane %v1980, 3
        %v2012 = vsel %vm896, %v2009, %v2011
        %v2021 = vadd.f32 %v1960, %v1995
        %v2022 = vadd.f32 %v1961, %v1997
        %v2023 = vadd.f32 %v1962, %v2000
        %v2024 = vadd.f32 %v1963, %v2002
        %v2025 = vadd.f32 %v1964, %v2005
        %v2026 = vadd.f32 %v1965, %v2007
        %v2027 = vadd.f32 %v1966, %v2010
        %v2028 = vadd.f32 %v1967, %v2012
        %v2029 = vperm.slane %v717, 0
        %v2030 = vmul.f32 %v1817, %v2029
        %v2031 = vmul.f32 %v1818, %v2029
        %v2032 = vmul.f32 %v1819, %v2029
        %v2033 = vmul.f32 %v1820, %v2029
        %v2034 = vmul.f32 %v1821, %v2029
        %v2035 = vmul.f32 %v1822, %v2029
        %v2036 = vmul.f32 %v1823, %v2029
        %v2037 = vmul.f32 %v1824, %v2029
        %v2038 = vmul.f32 %v1825, %v2029
        %v2039 = vmul.f32 %v1826, %v2029
        %v2040 = vmul.f32 %v1827, %v2029
        %v2041 = vmul.f32 %v1828, %v2029
        %v2054 = vrot.slane %v2030, 4
        %v2055 = vrot.slane %v2031, 4
        %v2056 = vsel %vm958, %v2054, %v2055
        %v2057 = vrot.slane %v2032, 4
        %v2058 = vsel %vm958, %v2055, %v2057
        %v2059 = vrot.slane %v2033, 4
        %v2060 = vrot.slane %v2034, 4
        %v2061 = vsel %vm958, %v2059, %v2060
        %v2062 = vrot.slane %v2035, 4
        %v2063 = vsel %vm958, %v2060, %v2062
        %v2064 = vrot.slane %v2036, 4
        %v2065 = vrot.slane %v2037, 4
        %v2066 = vsel %vm958, %v2064, %v2065
        %v2067 = vrot.slane %v2038, 4
        %v2068 = vsel %vm958, %v2065, %v2067
        %v2069 = vrot.slane %v2039, 4
        %v2070 = vrot.slane %v2040, 4
        %v2071 = vsel %vm958, %v2069, %v2070
        %v2072 = vrot.slane %v2041, 4
        %v2073 = vsel %vm958, %v2070, %v2072
        %v2082 = vadd.f32 %v2021, %v2056
        %v2083 = vadd.f32 %v2022, %v2058
        %v2084 = vadd.f32 %v2023, %v2061
        %v2085 = vadd.f32 %v2024, %v2063
        %v2086 = vadd.f32 %v2025, %v2066
        %v2087 = vadd.f32 %v2026, %v2068
        %v2088 = vadd.f32 %v2027, %v2071
        %v2089 = vadd.f32 %v2028, %v2073
        %v2090 = vld [vmem:[%s6] sm:$0x1]
        %v2092 = vperm.slane %v2090, 0
        %v2094 = vadd.f32 %v2082, %v2092
        %v2095 = vadd.f32 %v2083, %v2092
        %v2096 = vadd.f32 %v2084, %v2092
        %v2097 = vadd.f32 %v2085, %v2092
        %v2098 = vadd.f32 %v2086, %v2092
        %v2099 = vadd.f32 %v2087, %v2092
        %v2100 = vadd.f32 %v2088, %v2092
        %v2101 = vadd.f32 %v2089, %v2092
        %v2102 = vsub.f32 0.0, %v2094
        %v2103 = vsub.f32 0.0, %v2095
        %v2104 = vsub.f32 0.0, %v2096
        %v2105 = vsub.f32 0.0, %v2097
        %v2106 = vsub.f32 0.0, %v2098
        %v2107 = vsub.f32 0.0, %v2099
        %v2108 = vsub.f32 0.0, %v2100
        %v2109 = vsub.f32 0.0, %v2101
        %v2110 = vmul.f32 %v2102, 1.442695
        %v2111 = vpow.pop %v2110
        %v2112 = vmul.f32 %v2103, 1.442695
        %v2113 = vpow.pop %v2112
        %v2114 = vmul.f32 %v2104, 1.442695
        %v2115 = vpow.pop %v2114
        %v2116 = vmul.f32 %v2105, 1.442695
        %v2117 = vpow.pop %v2116
        %v2118 = vmul.f32 %v2106, 1.442695
        %v2119 = vpow.pop %v2118
        %v2120 = vmul.f32 %v2107, 1.442695
        %v2121 = vpow.pop %v2120
        %v2122 = vmul.f32 %v2108, 1.442695
        %v2123 = vpow.pop %v2122
        %v2124 = vmul.f32 %v2109, 1.442695
        %v2125 = vpow.pop %v2124
        %v2126 = vadd.f32 %v2111, 1.0
        %v2127 = vadd.f32 %v2113, 1.0
        %v2128 = vadd.f32 %v2115, 1.0
        %v2129 = vadd.f32 %v2117, 1.0
        %v2130 = vadd.f32 %v2119, 1.0
        %v2131 = vadd.f32 %v2121, 1.0
        %v2132 = vadd.f32 %v2123, 1.0
        %v2133 = vadd.f32 %v2125, 1.0
        %v2134 = vrcp.pop %v2126
        %v2135 = vrcp.pop %v2127
        %v2136 = vrcp.pop %v2128
        %v2137 = vrcp.pop %v2129
        %v2138 = vrcp.pop %v2130
        %v2139 = vrcp.pop %v2131
        %v2140 = vrcp.pop %v2132
        %v2141 = vrcp.pop %v2133
        %v2142 = vmul.f32 %v2094, %v2134
        %v2143 = vmul.f32 %v2095, %v2135
        %v2144 = vmul.f32 %v2096, %v2136
        %v2145 = vmul.f32 %v2097, %v2137
        %v2146 = vmul.f32 %v2098, %v2138
        %v2147 = vmul.f32 %v2099, %v2139
        %v2148 = vmul.f32 %v2100, %v2140
        %v2149 = vmul.f32 %v2101, %v2141
        %2158 = vrot.lane.b32.xlu0 %v2142, 8
        %v2159 = vpop.permute.xlu0 %2158
        %2160 = vrot.lane.b32.xlu0 %v2143, 8
        %v2161 = vpop.permute.xlu0 %2160
        %2162 = vrot.lane.b32.xlu0 %v2144, 8
        %v2163 = vpop.permute.xlu0 %2162
        %2164 = vrot.lane.b32.xlu0 %v2145, 8
        %v2165 = vpop.permute.xlu0 %2164
        %2166 = vrot.lane.b32.xlu0 %v2146, 8
        %v2167 = vpop.permute.xlu0 %2166
        %2168 = vrot.lane.b32.xlu0 %v2147, 8
        %v2169 = vpop.permute.xlu0 %2168
        %2170 = vrot.lane.b32.xlu0 %v2148, 8
        %v2171 = vpop.permute.xlu0 %2170
        %2172 = vrot.lane.b32.xlu0 %v2149, 8
        %v2173 = vpop.permute.xlu0 %2172
        %vm2182 = vcmask 130112
        %2183 = vst.msk [vmem:[%s348] sm:$0xff] %vm2182, %v2159
        %2184 = vst.msk [vmem:[%s348 + $0x8] sm:$0xff] %vm2182, %v2161
        %2185 = vst.msk [vmem:[%s348 + $0x10] sm:$0xff] %vm2182, %v2163
        %2186 = vst.msk [vmem:[%s348 + $0x18] sm:$0xff] %vm2182, %v2165
        %2187 = vst.msk [vmem:[%s348 + $0x20] sm:$0xff] %vm2182, %v2167
        %2188 = vst.msk [vmem:[%s348 + $0x28] sm:$0xff] %vm2182, %v2169
        %2189 = vst.msk [vmem:[%s348 + $0x30] sm:$0xff] %vm2182, %v2171
        %2190 = vst.msk [vmem:[%s348 + $0x38] sm:$0xff] %vm2182, %v2173
        %s2191 = sand.u32 %s211, 1
        %s2192 = scalar_lea.sflag [#allocation4], %s2191
        %s2193 = sand.u32 %s211, 1
        %s2194 = smul.addr %s2193, 64
        %s2195 = scalar_lea.vmem [#allocation3], %s2194
        // Predicated region
        $region57: #{tpu_custom_call.1} parent=47 // pred_check
          %p2196 = pneg %p221
        $region58: #{tpu_custom_call.1} parent=47 // pred_check_branch
          %2198 = sbr.rel (%p2196) target = $region60
        $region59: #{tpu_custom_call.1} parent=47 // pred_region
          %s2199 = smul.u32 4, %s26
          %2201 = vsyncadd %s2192, 0
          %s2202 = smul.addr %s2199, 2
          %s2203 = smul.addr %s25, 32
          %s2204 = sadd.s32 %s2202, %s2203
          %s2205 = smul.addr %s2204, 8
          %s2206 = scalar_lea.hbm %s7, %s2205
          %s2207 = sshll.u32 %s2195, 4
          %s2208 = int_to_ptr.vmem [resolvable:$true] %s2207
          %s2209 = sshll.u32 %s2206, 4
          %s2210 = int_to_ptr.hbm [resolvable:$true] %s2209
          %2215 = dma.vmem_to_hbm [thread:$0]  %s2208, 1024, %s2210, %s2192, 128, 128, 8
        $region60: #{tpu_custom_call.1} parent=47 // pred_fallthru
          _
      $region48: #{tpu_custom_call.1} parent=5 // pred_fallthru
        _
      %p2216 = scmp.le.s32.totalorder 2, %s16
      // Predicated region
      $region61: #{tpu_custom_call.1} parent=5 // pred_check
        %p2217 = pneg %p2216
      $region62: #{tpu_custom_call.1} parent=5 // pred_check_branch
        %2219 = sbr.rel (%p2217) target = $region64
      $region63: #{tpu_custom_call.1} parent=5 // pred_region
        %s2220 = ssub.s32 %s16, 2
        // Predicated region
        $region65: #{tpu_custom_call.1} parent=63 // pred_check
          %p2221 = pneg %p227
        $region66: #{tpu_custom_call.1} parent=63 // pred_check_branch
          %2223 = sbr.rel (%p2221) target = $region68
        $region67: #{tpu_custom_call.1} parent=63 // pred_region
          %s2224 = sand.u32 %s212, 1
          %s2225 = scalar_lea.sflag [#allocation4], %s2224
          %s2226 = sand.u32 %s212, 1
          %s2227 = smul.addr %s2226, 64
          %s2228 = scalar_lea.vmem [#allocation3], %s2227
          %2230 = dma.done %s2225, 1024
        $region68: #{tpu_custom_call.1} parent=63 // pred_fallthru
          _
      $region64: #{tpu_custom_call.1} parent=5 // pred_fallthru
        _
    $region6: #{tpu_custom_call.1} parent=1 // loop_footer
      %s20 = sadd.s32 1, %s16
    $region7: #{tpu_custom_call.1} parent=1 // loop_footer_branch
      %15 = sbr.rel target = $region3
    $region8: #{tpu_custom_call.1} parent=1 // loop_exit
      _
    %2231 = vsyncpa [#allocation4], 1
    %s2232 = scalar_lea.sflag [#allocation4], 1
    %2233 = vsyncpa %s2232, 1

</llo_original>
